<compile_context>
chip_gen: v6e
topology: v6e:2x2x1
jax: 0.10.0
libtpu: 0.0.40
codegen_flags: <defaults>
</compile_context>

<pallas_src>
import functools

import jax
import jax.numpy as jnp
from jax.experimental import pallas as pl
from jax.experimental.pallas import tpu as pltpu


def _round_up(x, m):
    return ((x + m - 1) // m) * m


# ----------------------------- Pallas kernels -----------------------------

def _conv_matmul_stats_kernel(m_total, tm, a_ref, w_ref, y_ref, psum_ref, psq_ref):
    """Conv matmul tile + fused per-tile BN partial statistics.

    a_ref:    (tm, K)      im2col patches tile
    w_ref:    (K, Cpad)    weight (channel-padded, resident across the grid)
    y_ref:    (tm, Cpad)   conv output tile (lane-dense)
    psum_ref: (1, 8, Cpad) per-tile sum   over valid rows (broadcast on sublanes)
    psq_ref:  (1, 8, Cpad) per-tile sum^2 over valid rows
    """
    y = jnp.dot(a_ref[...], w_ref[...], preferred_element_type=jnp.float32)
    y_ref[...] = y

    # Mask rows of the ragged last tile so batch statistics stay exact.
    row = jax.lax.broadcasted_iota(jnp.int32, y.shape, 0) + pl.program_id(0) * tm
    ym = jnp.where(row < m_total, y, 0.0)

    cpad = y.shape[1]
    s = jnp.sum(ym, axis=0, keepdims=True)          # (1, Cpad)
    ss = jnp.sum(ym * ym, axis=0, keepdims=True)    # (1, Cpad)
    psum_ref[...] = jnp.broadcast_to(s[None], (1, 8, cpad))
    psq_ref[...] = jnp.broadcast_to(ss[None], (1, 8, cpad))


def _bn_silu_nchw_kernel(y_ref, scale_ref, shift_ref, o_ref):
    """Fused BN affine + SiLU, writing the NCHW-ordered (transposed) block.

    y_ref:     (1, ts, Cpad)   conv output block (spatial rows x channels)
    scale_ref: (1, Cpad)
    shift_ref: (1, Cpad)
    o_ref:     (1, Cout8, ts)  NCHW-ordered output block (lane-dense on spatial)
    """
    z = y_ref[0] * scale_ref[...] + shift_ref[...]      # (ts, Cpad)
    act = z * jax.nn.sigmoid(z)                         # SiLU
    act_t = act.T                                       # (Cpad, ts) via XLU
    o_ref[0] = act_t[: o_ref.shape[1], :]


# ------------------------------- wrappers ----------------------------------

def _pallas_conv_matmul_stats(patches, w_pad, *, tm_max=512):
    """patches: (M, K) f32, w_pad: (K, Cpad) f32.

    Returns y (M, Cpad) plus per-tile partial sums / sums-of-squares
    (grid_m, 8, Cpad) (only sublane row 0 is meaningful).
    """
    M, K = patches.shape
    Cpad = w_pad.shape[1]

    tm = M if M <= tm_max else tm_max
    if M > tm_max:
        # Keep the double-buffered working set under a conservative VMEM budget.
        while tm > 128 and 8 * (tm * (K + Cpad)) + 8 * K * Cpad > 24 * 1024 * 1024:
            tm //= 2
    # TODO(synk): add K/Cout tiling with an f32 accumulator (grid k-axis
    # 'arbitrary') for large Cin*k*k / Cout so the whole weight need not be
    # VMEM-resident (matters most under v7x's 64 MiB VMEM).

    grid_m = pl.cdiv(M, tm)

    y, psum, psq = pl.pallas_call(
        functools.partial(_conv_matmul_stats_kernel, M, tm),
        out_shape=(
            jax.ShapeDtypeStruct((M, Cpad), jnp.float32),
            jax.ShapeDtypeStruct((grid_m, 8, Cpad), jnp.float32),
            jax.ShapeDtypeStruct((grid_m, 8, Cpad), jnp.float32),
        ),
        grid_spec=pltpu.PrefetchScalarGridSpec(
            num_scalar_prefetch=0,
            grid=(grid_m,),
            in_specs=[
                pl.BlockSpec((tm, K), lambda i: (i, 0)),
                # Constant weight block (index (0,0) every step); small here.
                pl.BlockSpec((K, Cpad), lambda i: (0, 0)),
            ],
            out_specs=(
                pl.BlockSpec((tm, Cpad), lambda i: (i, 0)),
                pl.BlockSpec((1, 8, Cpad), lambda i: (i, 0, 0)),
                pl.BlockSpec((1, 8, Cpad), lambda i: (i, 0, 0)),
            ),
        ),
        compiler_params=pltpu.CompilerParams(
            dimension_semantics=("parallel",),
            vmem_limit_bytes=32 * 1024 * 1024,
        ),
        cost_estimate=pl.CostEstimate(
            flops=2 * M * K * Cpad,
            transcendentals=0,
            bytes_accessed=4 * (M * K + K * Cpad + M * Cpad),
        ),
    )(patches, w_pad)
    return y, psum, psq


def _pallas_bn_silu_nchw(y3, scale, shift, cout8, *, ts_max=512):
    """y3: (N, S, Cpad); scale/shift: (Cpad,). Returns (N, cout8, S) NCHW-ordered."""
    N, S, Cpad = y3.shape
    ts = S if S <= ts_max else ts_max          # ts==S or a 128-multiple tile
    grid_s = pl.cdiv(S, ts)

    scale2 = scale.reshape(1, Cpad).astype(jnp.float32)
    shift2 = shift.reshape(1, Cpad).astype(jnp.float32)

    out = pl.pallas_call(
        _bn_silu_nchw_kernel,
        out_shape=jax.ShapeDtypeStruct((N, cout8, S), jnp.float32),
        grid_spec=pltpu.PrefetchScalarGridSpec(
            num_scalar_prefetch=0,
            grid=(N, grid_s),
            in_specs=[
                pl.BlockSpec((1, ts, Cpad), lambda n, s: (n, s, 0)),
                pl.BlockSpec((1, Cpad), lambda n, s: (0, 0)),
                pl.BlockSpec((1, Cpad), lambda n, s: (0, 0)),
            ],
            out_specs=pl.BlockSpec((1, cout8, ts), lambda n, s: (n, 0, s)),
        ),
        compiler_params=pltpu.CompilerParams(
            dimension_semantics=("parallel", "parallel"),
            vmem_limit_bytes=32 * 1024 * 1024,
        ),
        cost_estimate=pl.CostEstimate(
            flops=4 * N * S * Cpad,
            transcendentals=N * S * Cpad,
            bytes_accessed=4 * (N * S * Cpad + N * S * cout8),
        ),
    )(y3, scale2, shift2)
    return out


def _im2col(x, k, stride, padding):
    """x: (N, Cin, H, W) -> patches (N*Ho*Wo, Cin*k*k), plus (Ho, Wo)."""
    N, Cin, H, W = x.shape
    if padding > 0:
        x = jnp.pad(x, ((0, 0), (0, 0), (padding, padding), (padding, padding)))
    Hp, Wp = H + 2 * padding, W + 2 * padding
    Ho = (Hp - k) // stride + 1
    Wo = (Wp - k) // stride + 1

    if k == 1:
        # 1x1 conv: no tap gather needed, just NCHW -> (M, Cin).
        p = x[:, :, : stride * Ho : stride, : stride * Wo : stride]
        patches = p.transpose(0, 2, 3, 1).reshape(N * Ho * Wo, Cin)
        return patches, Ho, Wo

    # TODO(synk): for k>1 fuse the kxk tap gather into the Pallas matmul kernel
    # (or call lax.conv_general_dilated) instead of materializing a k^2-times
    # larger im2col copy through HBM.
    slices = []
    for ki in range(k):
        for kj in range(k):
            slices.append(
                x[:, :, ki:ki + stride * Ho:stride, kj:kj + stride * Wo:stride]
            )  # (N, Cin, Ho, Wo)
    p = jnp.stack(slices, axis=0).transpose(1, 3, 4, 2, 0)  # (N,Ho,Wo,Cin,k*k)
    patches = p.reshape(N * Ho * Wo, Cin * k * k)
    return patches, Ho, Wo


@functools.partial(jax.jit, static_argnames=("kernel_size", "stride", "padding"))
def conv_block_forward(x, conv_weight, bn_gamma, bn_beta,
                       kernel_size=1, stride=1, padding=0, eps=1e-5):
    """ConvBlock.forward.

    x:           (N, Cin, H, W)  NCHW
    conv_weight: (Cout, Cin, k, k)
    bn_gamma, bn_beta: (Cout,)
    Returns (N, Cout, Ho, Wo) NCHW.

    BatchNorm uses training-mode semantics (fresh nn.Module defaults to
    train()): per-channel mean and *biased* variance over (N, Ho, Wo).
    """
    N, Cin, H, W = x.shape
    Cout = conv_weight.shape[0]
    k = kernel_size
    K = Cin * k * k

    patches, Ho, Wo = _im2col(x.astype(jnp.float32), k, stride, padding)
    M = N * Ho * Wo
    S = Ho * Wo

    # Lane-dense channel padding (zeros in padded channels; sliced off at end).
    Cpad = _round_up(max(Cout, 128), 128)
    Cout8 = _round_up(Cout, 8)

    w_mat = conv_weight.reshape(Cout, K).T.astype(jnp.float32)          # (K, Cout)
    w_pad = jnp.zeros((K, Cpad), jnp.float32).at[:, :Cout].set(w_mat)   # (K, Cpad)

    # Conv matmul on the MXU with fused per-tile BN partial statistics.
    y, psum, psq = _pallas_conv_matmul_stats(patches, w_pad)            # y: (M, Cpad)

    # Finalize batch statistics (tiny XLA op over per-tile partials).
    sums = psum[:, 0, :].sum(axis=0)                                    # (Cpad,)
    sumsq = psq[:, 0, :].sum(axis=0)
    mean = sums / M
    var = jnp.maximum(sumsq / M - mean * mean, 0.0)                     # biased var

    gamma_pad = jnp.zeros((Cpad,), jnp.float32).at[:Cout].set(bn_gamma.astype(jnp.float32))
    beta_pad = jnp.zeros((Cpad,), jnp.float32).at[:Cout].set(bn_beta.astype(jnp.float32))
    scale = gamma_pad * jax.lax.rsqrt(var + eps)
    shift = beta_pad - mean * scale

    # Fused normalize + affine + SiLU; kernel writes NCHW-ordered blocks.
    y3 = y.reshape(N, S, Cpad)                                          # free reshape
    out = _pallas_bn_silu_nchw(y3, scale, shift, Cout8)                 # (N, Cout8, S)
    out = out.reshape(N, Cout8, Ho, Wo)
    if Cout8 != Cout:
        out = out[:, :Cout]
    return out


# --------------------------------- main -------------------------------------

if __name__ == "__main__":
    # ConvBlock(feature_input=4, feature_output=8) with default k=1, s=1, p=0.
    N, Cin, H, W = 2, 4, 16, 16
    Cout, k, stride, padding = 8, 1, 1, 0

    key = jax.random.PRNGKey(0)
    kx, kw = jax.random.split(key)

    x = jax.random.normal(kx, (N, Cin, H, W), dtype=jnp.float32)
    # Deterministic synthetic conv weight (PyTorch would use kaiming uniform).
    conv_weight = 0.1 * jax.random.normal(kw, (Cout, Cin, k, k), dtype=jnp.float32)
    # BatchNorm2d default init: gamma = 1, beta = 0.
    bn_gamma = jnp.ones((Cout,), dtype=jnp.float32)
    bn_beta = jnp.zeros((Cout,), dtype=jnp.float32)

    out = conv_block_forward(x, conv_weight, bn_gamma, bn_beta,
                             kernel_size=k, stride=stride, padding=padding)
    jax.block_until_ready(out)

    # Reference check in plain JAX (same math, two-pass variance).
    patches_ref = x.transpose(0, 2, 3, 1).reshape(-1, Cin * k * k)
    y_ref = patches_ref @ conv_weight.reshape(Cout, Cin * k * k).T
    m = y_ref.mean(0)
    v = ((y_ref - m) ** 2).mean(0)
    z = (y_ref - m) / jnp.sqrt(v + 1e-5) * bn_gamma + bn_beta
    ref = (z * jax.nn.sigmoid(z)).reshape(N, H, W, Cout).transpose(0, 3, 1, 2)

    assert out.shape == (N, Cout, H, W), out.shape
    assert jnp.allclose(out, ref, atol=3e-4, rtol=1e-3), \
        float(jnp.abs(out - ref).max())

    print("KERNEL_OK")
</pallas_src>

<mosaic_0001>
module attributes {stable_mosaic.version = 11 : i64} {
  func.func @_conv_matmul_stats_kernel(%arg0: i32, %arg1: memref<512x4xf32, #tpu.memory_space<vmem>>, %arg2: memref<4x128xf32, #tpu.memory_space<vmem>>, %arg3: memref<512x128xf32, #tpu.memory_space<vmem>>, %arg4: memref<1x8x128xf32, #tpu.memory_space<vmem>>, %arg5: memref<1x8x128xf32, #tpu.memory_space<vmem>>) attributes {dimension_semantics = [#tpu.dimension_semantics<parallel>], iteration_bounds = array<i64: 1>, scalar_prefetch = 0 : i64, scratch_operands = 0 : i64, tpu.core_type = #tpu.core_type<tc>, window_params = [{transform_indices = @transform_0, window_bounds = array<i64: 512, 4>}, {pipeline_mode = #tpu.pipeline_mode<synchronous>, transform_indices = @transform_1, window_bounds = array<i64: 4, 128>}, {transform_indices = @transform_2, window_bounds = array<i64: 512, 128>}, {transform_indices = @transform_3, window_bounds = array<i64: 1, 8, 128>}, {transform_indices = @transform_4, window_bounds = array<i64: 1, 8, 128>}]} {
    %c0 = arith.constant 0 : index
    %c0_0 = arith.constant 0 : index
    %0 = vector.load %arg1[%c0, %c0_0] : memref<512x4xf32, #tpu.memory_space<vmem>>, vector<512x4xf32>
    %c0_1 = arith.constant 0 : index
    %c0_2 = arith.constant 0 : index
    %1 = vector.load %arg2[%c0_1, %c0_2] : memref<4x128xf32, #tpu.memory_space<vmem>>, vector<4x128xf32>
    %cst = arith.constant dense<0.000000e+00> : vector<512x128xf32>
    %2 = tpu.matmul %0, %1, %cst {dimension_numbers = #tpu.dot_dimension_numbers<[1], [0], [0], [1], [0, 0, 1, 1], [], []>} : vector<512x4xf32>, vector<4x128xf32>, vector<512x128xf32> -> vector<512x128xf32>
    %c0_3 = arith.constant 0 : index
    %c0_4 = arith.constant 0 : index
    %3 = vector.load %arg3[%c0_3, %c0_4] : memref<512x128xf32, #tpu.memory_space<vmem>>, vector<512x128xf32>
    tpu.vector_store %arg3[%c0_3, %c0_4], %2 {strides = array<i32>} : memref<512x128xf32, #tpu.memory_space<vmem>>, vector<512x128xf32>,
    %4 = tpu.iota {dimensions = array<i32: 0>} : vector<512x128xi32>
    %c512_i32 = arith.constant 512 : i32
    %5 = arith.muli %arg0, %c512_i32 : i32
    %6 = vector.broadcast %5 : i32 to vector<512x128xi32>
    %7 = arith.addi %4, %6 : vector<512x128xi32>
    %c512_i32_5 = arith.constant 512 : i32
    %8 = vector.broadcast %c512_i32_5 : i32 to vector<512x128xi32>
    %9 = arith.cmpi slt, %7, %8 : vector<512x128xi32>
    %cst_6 = arith.constant 0.000000e+00 : f32
    %10 = vector.broadcast %cst_6 : f32 to vector<512x128xf32>
    %11 = arith.select %9, %2, %10 : vector<512x128xi1>, vector<512x128xf32>
    %cst_7 = arith.constant dense<0.000000e+00> : vector<128xf32>
    %12 = vector.multi_reduction <add>, %11, %cst_7 [0] : vector<512x128xf32> to vector<128xf32>
    %13 = vector.shape_cast %12 : vector<128xf32> to vector<1x128xf32>
    %14 = arith.mulf %11, %11 : vector<512x128xf32>
    %cst_8 = arith.constant dense<0.000000e+00> : vector<128xf32>
    %15 = vector.multi_reduction <add>, %14, %cst_8 [0] : vector<512x128xf32> to vector<128xf32>
    %16 = vector.shape_cast %15 : vector<128xf32> to vector<1x128xf32>
    %17 = vector.shape_cast %13 : vector<1x128xf32> to vector<1x1x128xf32>
    %18 = vector.shape_cast %17 : vector<1x1x128xf32> to vector<1x1x128xf32>
    %19 = vector.broadcast %18 : vector<1x1x128xf32> to vector<1x8x128xf32>
    %c0_9 = arith.constant 0 : index
    %c0_10 = arith.constant 0 : index
    %c0_11 = arith.constant 0 : index
    %20 = vector.load %arg4[%c0_9, %c0_10, %c0_11] : memref<1x8x128xf32, #tpu.memory_space<vmem>>, vector<1x8x128xf32>
    tpu.vector_store %arg4[%c0_9, %c0_10, %c0_11], %19 {strides = array<i32>} : memref<1x8x128xf32, #tpu.memory_space<vmem>>, vector<1x8x128xf32>,
    %21 = vector.shape_cast %16 : vector<1x128xf32> to vector<1x1x128xf32>
    %22 = vector.shape_cast %21 : vector<1x1x128xf32> to vector<1x1x128xf32>
    %23 = vector.broadcast %22 : vector<1x1x128xf32> to vector<1x8x128xf32>
    %c0_12 = arith.constant 0 : index
    %c0_13 = arith.constant 0 : index
    %c0_14 = arith.constant 0 : index
    %24 = vector.load %arg5[%c0_12, %c0_13, %c0_14] : memref<1x8x128xf32, #tpu.memory_space<vmem>>, vector<1x8x128xf32>
    tpu.vector_store %arg5[%c0_12, %c0_13, %c0_14], %23 {strides = array<i32>} : memref<1x8x128xf32, #tpu.memory_space<vmem>>, vector<1x8x128xf32>,
    return
  }
  func.func @transform_0(%arg0: i32) -> (i32, i32) {
    %c0_i32 = arith.constant 0 : i32
    %c0_i32_0 = arith.constant 0 : i32
    return %arg0, %c0_i32 : i32, i32
  }
  func.func @transform_1(%arg0: i32) -> (i32, i32) {
    %c0_i32 = arith.constant 0 : i32
    %c0_i32_0 = arith.constant 0 : i32
    %c0_i32_1 = arith.constant 0 : i32
    return %c0_i32, %c0_i32_0 : i32, i32
  }
  func.func @transform_2(%arg0: i32) -> (i32, i32) {
    %c0_i32 = arith.constant 0 : i32
    %c0_i32_0 = arith.constant 0 : i32
    return %arg0, %c0_i32 : i32, i32
  }
  func.func @transform_3(%arg0: i32) -> (i32, i32, i32) {
    %c0_i32 = arith.constant 0 : i32
    %c0_i32_0 = arith.constant 0 : i32
    %c0_i32_1 = arith.constant 0 : i32
    return %arg0, %c0_i32, %c0_i32_0 : i32, i32, i32
  }
  func.func @transform_4(%arg0: i32) -> (i32, i32, i32) {
    %c0_i32 = arith.constant 0 : i32
    %c0_i32_0 = arith.constant 0 : i32
    %c0_i32_1 = arith.constant 0 : i32
    return %arg0, %c0_i32, %c0_i32_0 : i32, i32, i32
  }
}

module attributes {stable_mosaic.version = 11 : i64} {
  func.func @_bn_silu_nchw_kernel(%arg0: i32, %arg1: i32, %arg2: memref<1x256x128xf32, #tpu.memory_space<vmem>>, %arg3: memref<1x128xf32, #tpu.memory_space<vmem>>, %arg4: memref<1x128xf32, #tpu.memory_space<vmem>>, %arg5: memref<1x8x256xf32, #tpu.memory_space<vmem>>) attributes {dimension_semantics = [#tpu.dimension_semantics<parallel>, #tpu.dimension_semantics<parallel>], iteration_bounds = array<i64: 2, 1>, scalar_prefetch = 0 : i64, scratch_operands = 0 : i64, tpu.core_type = #tpu.core_type<tc>, window_params = [{transform_indices = @transform_0, window_bounds = array<i64: 1, 256, 128>}, {pipeline_mode = #tpu.pipeline_mode<synchronous>, transform_indices = @transform_1, window_bounds = array<i64: 1, 128>}, {pipeline_mode = #tpu.pipeline_mode<synchronous>, transform_indices = @transform_2, window_bounds = array<i64: 1, 128>}, {transform_indices = @transform_3, window_bounds = array<i64: 1, 8, 256>}]} {
    %c0 = arith.constant 0 : index
    %c0_0 = arith.constant 0 : index
    %c0_1 = arith.constant 0 : index
    %0 = vector.load %arg2[%c0, %c0_0, %c0_1] : memref<1x256x128xf32, #tpu.memory_space<vmem>>, vector<1x256x128xf32>
    %1 = vector.shape_cast %0 : vector<1x256x128xf32> to vector<256x128xf32>
    %c0_2 = arith.constant 0 : index
    %c0_3 = arith.constant 0 : index
    %2 = vector.load %arg3[%c0_2, %c0_3] : memref<1x128xf32, #tpu.memory_space<vmem>>, vector<1x128xf32>
    %3 = vector.broadcast %2 : vector<1x128xf32> to vector<256x128xf32>
    %4 = arith.mulf %1, %3 : vector<256x128xf32>
    %c0_4 = arith.constant 0 : index
    %c0_5 = arith.constant 0 : index
    %5 = vector.load %arg4[%c0_4, %c0_5] : memref<1x128xf32, #tpu.memory_space<vmem>>, vector<1x128xf32>
    %6 = vector.broadcast %5 : vector<1x128xf32> to vector<256x128xf32>
    %7 = arith.addf %4, %6 : vector<256x128xf32>
    %8 = arith.negf %7 : vector<256x128xf32>
    %9 = math.exp %8 : vector<256x128xf32>
    %cst = arith.constant 1.000000e+00 : f32
    %10 = vector.broadcast %cst : f32 to vector<256x128xf32>
    %11 = arith.addf %10, %9 : vector<256x128xf32>
    %12 = arith.divf %10, %11 : vector<256x128xf32>
    %13 = arith.mulf %7, %12 : vector<256x128xf32>
    %14 = tpu.transpose %13, [1, 0] : vector<256x128xf32> -> vector<128x256xf32>
    %15 = vector.extract_strided_slice %14 {offsets = [0, 0], sizes = [8, 256], strides = [1, 1]} : vector<128x256xf32> to vector<8x256xf32>
    %c0_6 = arith.constant 0 : index
    %c0_7 = arith.constant 0 : index
    %c0_8 = arith.constant 0 : index
    %16 = vector.load %arg5[%c0_6, %c0_7, %c0_8] : memref<1x8x256xf32, #tpu.memory_space<vmem>>, vector<1x8x256xf32>
    %17 = vector.shape_cast %16 : vector<1x8x256xf32> to vector<8x256xf32>
    %18 = vector.shape_cast %15 : vector<8x256xf32> to vector<1x8x256xf32>
    tpu.vector_store %arg5[%c0_6, %c0_7, %c0_8], %18 {strides = array<i32>} : memref<1x8x256xf32, #tpu.memory_space<vmem>>, vector<1x8x256xf32>,
    return
  }
  func.func @transform_0(%arg0: i32, %arg1: i32) -> (i32, i32, i32) {
    %c0_i32 = arith.constant 0 : i32
    %c0_i32_0 = arith.constant 0 : i32
    return %arg0, %arg1, %c0_i32 : i32, i32, i32
  }
  func.func @transform_1(%arg0: i32, %arg1: i32) -> (i32, i32) {
    %c0_i32 = arith.constant 0 : i32
    %c0_i32_0 = arith.constant 0 : i32
    %c0_i32_1 = arith.constant 0 : i32
    return %c0_i32, %c0_i32_0 : i32, i32
  }
  func.func @transform_2(%arg0: i32, %arg1: i32) -> (i32, i32) {
    %c0_i32 = arith.constant 0 : i32
    %c0_i32_0 = arith.constant 0 : i32
    %c0_i32_1 = arith.constant 0 : i32
    return %c0_i32, %c0_i32_0 : i32, i32
  }
  func.func @transform_3(%arg0: i32, %arg1: i32) -> (i32, i32, i32) {
    %c0_i32 = arith.constant 0 : i32
    %c0_i32_0 = arith.constant 0 : i32
    return %arg0, %c0_i32, %arg1 : i32, i32, i32
  }
}

</mosaic_0001>

<llo_original>
// kernel: conv_block_forward.3
$region0: #{conv_block_forward.3}
  #allocation0 [shape = 'u32[]', space=smem, size = 0x4, offset = 0x4, fixed_abs, tag = 'smem constant byte address 0x4 - core index']
  #allocation1 [shape = 'u32[144,128]{1,0:T(1,128)}', space=vmem, size = 0x12000, scoped, tag = 'internal scratch']
  %s0 = inlined_call_operand.vmem [shape: f32[2,256,128], index: 0, kind: input, shape index: {}]
  %s1 = inlined_call_operand.vmem [shape: f32[1,128], index: 1, kind: input, shape index: {}]
  %s2 = inlined_call_operand.vmem [shape: f32[1,128], index: 2, kind: input, shape index: {}]
  %s3 = inlined_call_operand.vmem [shape: f32[2,8,256], index: 3, kind: output, shape index: {}]
  %s4 = sld [smem:[#allocation0]]
  $region45: #{conv_block_forward.3} parent=0
    _
  %s6 = ssub.s32 1, %s4
  %s7 = scalar_select 0, %s6, %s4
  loop: start=0, step=1, limit=4
  $region2: #{conv_block_forward.3} parent=0 // loop_pre_header
    _
  $region3: #{conv_block_forward.3} parent=0 // loop_header
    %s9 = sphi 0, %s13
    %p10 = scmp.ge.s32.totalorder %s9, 4
    %s16 = sphi 0, %s28
    %s17 = sphi 0, %s24
    %s18 = sphi 0, %s16
    %s19 = sphi 0, %s17
    %s20 = sphi 0, %s18
    %s21 = sphi 0, %s19
    %s33 = sphi 0, %s35
    %s36 = sphi 0, %s33
    %s37 = sphi 0, %s36
    %s53 = sphi 0, %s37
    %s57 = sphi 0, %s57
    %s59 = sphi 0, %s57
    %s60 = sphi 0, %s59
    %s74 = sphi 0, %s60
    %s78 = sphi 0, %s78
    %s80 = sphi 0, %s78
    %s81 = sphi 0, %s80
    %s95 = sphi 0, %s81
    %s103 = sphi 0, %s105
    %s106 = sphi 0, %s103
    %s107 = sphi 0, %s106
    %s123 = sphi 0, %s107
  $region4: #{conv_block_forward.3} parent=0 // loop_header_branch
    %12 = sbr.rel (%p10) target = $region8
  $region5: #{conv_block_forward.3} parent=0 // loop_body
    %s14 = ssub.s32 %s9, 1
    %s15 = ssub.s32 %s9, 2
    %s22 = sadd.s32 1, %s17
    %p23 = scmp.ge.s32.totalorder %s22, 1
    %s24 = scalar_select %p23, 0, %s22
    %s25 = sadd.s32 1, %s16
    %s26 = scalar_select %p23, %s25, %s16
    %p27 = scmp.ge.s32.totalorder %s26, 2
    %s28 = scalar_select %p27, 0, %s26
    %s29 = ssub.s32 %s16, %s28
    %s30 = ssub.s32 %s17, %s24
    %s31 = sor.u32 %s29, %s30
    %p32 = scmp.eq.s32.totalorder %s31, 0
    %s34 = sadd.s32 %s33, 1
    %s35 = scalar_select %p32, %s33, %s34
    %p38 = pneg %p32
    %p39 = scmp.eq.s32.totalorder %s9, 1
    %p40 = por %p38, %p39
    %p41 = scmp.ne.s32.totalorder %s33, %s36
    %p42 = scmp.eq.s32.totalorder %s9, 0
    %p43 = por %p41, %p42
    %p44 = scmp.ne.s32.totalorder %s33, %s36
    %p45 = scmp.eq.s32.totalorder %s14, 1
    %p46 = por %p44, %p45
    %p47 = scmp.ne.s32.totalorder %s36, %s37
    %p48 = scmp.eq.s32.totalorder %s14, 0
    %p49 = por %p47, %p48
    %p50 = scmp.ne.s32.totalorder %s36, %s37
    %p51 = scmp.eq.s32.totalorder %s15, 1
    %p52 = por %p50, %p51
    %p54 = scmp.ne.s32.totalorder %s37, %s53
    %p55 = scmp.eq.s32.totalorder %s15, 0
    %p56 = por %p54, %p55
    %s58 = sadd.s32 %s57, 1
    %p61 = scmp.eq.s32.totalorder %s9, 1
    %p62 = scmp.ne.s32.totalorder %s57, %s59
    %p63 = scmp.eq.s32.totalorder %s9, 0
    %p64 = por %p62, %p63
    %p65 = scmp.ne.s32.totalorder %s57, %s59
    %p66 = scmp.eq.s32.totalorder %s14, 1
    %p67 = por %p65, %p66
    %p68 = scmp.ne.s32.totalorder %s59, %s60
    %p69 = scmp.eq.s32.totalorder %s14, 0
    %p70 = por %p68, %p69
    %p71 = scmp.ne.s32.totalorder %s59, %s60
    %p72 = scmp.eq.s32.totalorder %s15, 1
    %p73 = por %p71, %p72
    %p75 = scmp.ne.s32.totalorder %s60, %s74
    %p76 = scmp.eq.s32.totalorder %s15, 0
    %p77 = por %p75, %p76
    %s79 = sadd.s32 %s78, 1
    %p82 = scmp.eq.s32.totalorder %s9, 1
    %p83 = scmp.ne.s32.totalorder %s78, %s80
    %p84 = scmp.eq.s32.totalorder %s9, 0
    %p85 = por %p83, %p84
    %p86 = scmp.ne.s32.totalorder %s78, %s80
    %p87 = scmp.eq.s32.totalorder %s14, 1
    %p88 = por %p86, %p87
    %p89 = scmp.ne.s32.totalorder %s80, %s81
    %p90 = scmp.eq.s32.totalorder %s14, 0
    %p91 = por %p89, %p90
    %p92 = scmp.ne.s32.totalorder %s80, %s81
    %p93 = scmp.eq.s32.totalorder %s15, 1
    %p94 = por %p92, %p93
    %p96 = scmp.ne.s32.totalorder %s81, %s95
    %p97 = scmp.eq.s32.totalorder %s15, 0
    %p98 = por %p96, %p97
    %s99 = ssub.s32 %s16, %s28
    %s100 = ssub.s32 %s17, %s24
    %s101 = sor.u32 %s99, %s100
    %p102 = scmp.eq.s32.totalorder %s101, 0
    %s104 = sadd.s32 %s103, 1
    %s105 = scalar_select %p102, %s103, %s104
    %p108 = pneg %p102
    %p109 = scmp.eq.s32.totalorder %s9, 1
    %p110 = por %p108, %p109
    %p111 = scmp.ne.s32.totalorder %s103, %s106
    %p112 = scmp.eq.s32.totalorder %s9, 0
    %p113 = por %p111, %p112
    %p114 = scmp.ne.s32.totalorder %s103, %s106
    %p115 = scmp.eq.s32.totalorder %s14, 1
    %p116 = por %p114, %p115
    %p117 = scmp.ne.s32.totalorder %s106, %s107
    %p118 = scmp.eq.s32.totalorder %s14, 0
    %p119 = por %p117, %p118
    %p120 = scmp.ne.s32.totalorder %s106, %s107
    %p121 = scmp.eq.s32.totalorder %s15, 1
    %p122 = por %p120, %p121
    %p124 = scmp.ne.s32.totalorder %s107, %s123
    %p125 = scmp.eq.s32.totalorder %s15, 0
    %p126 = por %p124, %p125
    %p127 = scmp.le.s32.totalorder 1, %s9
    %p128 = scmp.lt.s32.totalorder %s9, 3
    %p129 = pnand %p127, %p128
    %p130 = pneg %p129
    // Predicated region
    $region9: #{conv_block_forward.3} parent=5 // pred_check
      _
    $region10: #{conv_block_forward.3} parent=5 // pred_check_branch
      %132 = sbr.rel (%p129) target = $region12
    $region11: #{conv_block_forward.3} parent=5 // pred_region
      %s133 = ssub.s32 %s9, 1
      // Predicated region
      $region13: #{conv_block_forward.3} parent=11 // pred_check
        %p134 = pneg %p70
      $region14: #{conv_block_forward.3} parent=11 // pred_check_branch
        %136 = sbr.rel (%p134) target = $region16
      $region15: #{conv_block_forward.3} parent=11 // pred_region
        _
      $region16: #{conv_block_forward.3} parent=11 // pred_fallthru
        _
      // Predicated region
      $region17: #{conv_block_forward.3} parent=11 // pred_check
        %p137 = pneg %p91
      $region18: #{conv_block_forward.3} parent=11 // pred_check_branch
        %139 = sbr.rel (%p137) target = $region20
      $region19: #{conv_block_forward.3} parent=11 // pred_region
        _
      $region20: #{conv_block_forward.3} parent=11 // pred_fallthru
        _
    $region12: #{conv_block_forward.3} parent=5 // pred_fallthru
      _
    %p140 = scmp.lt.s32.totalorder %s9, 2
    // Predicated region
    $region21: #{conv_block_forward.3} parent=5 // pred_check
      %p141 = pneg %p140
    $region22: #{conv_block_forward.3} parent=5 // pred_check_branch
      %143 = sbr.rel (%p141) target = $region24
    $region23: #{conv_block_forward.3} parent=5 // pred_region
      // Predicated region
      $region25: #{conv_block_forward.3} parent=23 // pred_check
        %p144 = pneg %p43
      $region26: #{conv_block_forward.3} parent=23 // pred_check_branch
        %146 = sbr.rel (%p144) target = $region28
      $region27: #{conv_block_forward.3} parent=23 // pred_region
        %s147 = smul.u32 32, %s17
        %p148 = scmp.lt.s32.totalorder %s16, 1
        %s149 = scalar_select %p148, %s16, 1
        %p150 = scmp.lt.s32.totalorder %s147, 31
        %s151 = scalar_select %p150, %s147, 31
        %s152 = smul.addr %s149, 32
        %s153 = sadd.s32 %s151, %s152
        %s154 = smul.addr %s153, 8
        %s155 = scalar_lea.vmem %s0, %s154
        %s156 = smul.u32 32, %s17
      $region28: #{conv_block_forward.3} parent=23 // pred_fallthru
        _
    $region24: #{conv_block_forward.3} parent=5 // pred_fallthru
      _
    %p157 = scmp.le.s32.totalorder 1, %s9
    %p158 = scmp.lt.s32.totalorder %s9, 3
    %p159 = pnand %p157, %p158
    %p160 = pneg %p159
    // Predicated region
    $region29: #{conv_block_forward.3} parent=5 // pred_check
      _
    $region30: #{conv_block_forward.3} parent=5 // pred_check_branch
      %162 = sbr.rel (%p159) target = $region32
    $region31: #{conv_block_forward.3} parent=5 // pred_region
      %s163 = ssub.s32 %s9, 1
      %s164 = smul.u32 32, %s19
      %p165 = scmp.lt.s32.totalorder %s18, 1
      %s166 = scalar_select %p165, %s18, 1
      %p167 = scmp.lt.s32.totalorder %s164, 31
      %s168 = scalar_select %p167, %s164, 31
      %s169 = smul.addr %s166, 32
      %s170 = sadd.s32 %s168, %s169
      %s171 = smul.addr %s170, 8
      %s172 = scalar_lea.vmem %s0, %s171
      %p173 = pneg %p49
      %p174 = pneg %p46
      %p175 = pneg %p70
      %p176 = pneg %p67
      %p177 = pneg %p91
      %p178 = pneg %p88
      %p179 = pneg %p119
      %p180 = pneg %p116
      %s181 = smul.u32 2, %s19
      %p182 = scmp.lt.s32.totalorder %s18, 1
      %s183 = scalar_select %p182, %s18, 1
      %p184 = scmp.lt.s32.totalorder %s181, 1
      %s185 = scalar_select %p184, %s181, 1
      %s186 = smul.addr %s183, 2
      %s187 = sadd.s32 %s185, %s186
      %s188 = smul.addr %s187, 8
      %s189 = scalar_lea.vmem %s3, %s188
      %s190 = smul.u32 32, %s19
      %p191 = scmp.lt.s32.totalorder %s18, 1
      %s192 = scalar_select %p191, %s18, 1
      %p193 = scmp.lt.s32.totalorder %s190, 31
      %s194 = scalar_select %p193, %s190, 31
      %s195 = smul.addr %s192, 32
      %s196 = sadd.s32 %s194, %s195
      %s197 = smul.addr %s196, 8
      %s198 = scalar_lea.vmem %s0, %s197
      %s199 = smul.u32 32, %s19
      %s200 = smul.u32 2, %s19
      %p201 = scmp.lt.s32.totalorder %s18, 1
      %s202 = scalar_select %p201, %s18, 1
      %p203 = scmp.lt.s32.totalorder %s200, 1
      %s204 = scalar_select %p203, %s200, 1
      %s205 = smul.addr %s202, 2
      %s206 = sadd.s32 %s204, %s205
      %s207 = smul.addr %s206, 8
      %s208 = scalar_lea.vmem %s3, %s207
      %s209 = smul.u32 2, %s19
      %v210 = vld [vmem:[%s198] sm:$0xff]
      %v211 = vld [vmem:[%s198 + $0x8] sm:$0xff]
      %v212 = vld [vmem:[%s198 + $0x10] sm:$0xff]
      %v213 = vld [vmem:[%s198 + $0x18] sm:$0xff]
      %v214 = vld [vmem:[%s198 + $0x20] sm:$0xff]
      %v215 = vld [vmem:[%s198 + $0x28] sm:$0xff]
      %v216 = vld [vmem:[%s198 + $0x30] sm:$0xff]
      %v217 = vld [vmem:[%s198 + $0x38] sm:$0xff]
      %v218 = vld [vmem:[%s198 + $0x40] sm:$0xff]
      %v219 = vld [vmem:[%s198 + $0x48] sm:$0xff]
      %v220 = vld [vmem:[%s198 + $0x50] sm:$0xff]
      %v221 = vld [vmem:[%s198 + $0x58] sm:$0xff]
      %v222 = vld [vmem:[%s198 + $0x60] sm:$0xff]
      %v223 = vld [vmem:[%s198 + $0x68] sm:$0xff]
      %v224 = vld [vmem:[%s198 + $0x70] sm:$0xff]
      %v225 = vld [vmem:[%s198 + $0x78] sm:$0xff]
      %v226 = vld [vmem:[%s198 + $0x80] sm:$0xff]
      %v227 = vld [vmem:[%s198 + $0x88] sm:$0xff]
      %v228 = vld [vmem:[%s198 + $0x90] sm:$0xff]
      %v229 = vld [vmem:[%s198 + $0x98] sm:$0xff]
      %v230 = vld [vmem:[%s198 + $0xa0] sm:$0xff]
      %v231 = vld [vmem:[%s198 + $0xa8] sm:$0xff]
      %v232 = vld [vmem:[%s198 + $0xb0] sm:$0xff]
      %v233 = vld [vmem:[%s198 + $0xb8] sm:$0xff]
      %v234 = vld [vmem:[%s198 + $0xc0] sm:$0xff]
      %v235 = vld [vmem:[%s198 + $0xc8] sm:$0xff]
      %v236 = vld [vmem:[%s198 + $0xd0] sm:$0xff]
      %v237 = vld [vmem:[%s198 + $0xd8] sm:$0xff]
      %v238 = vld [vmem:[%s198 + $0xe0] sm:$0xff]
      %v239 = vld [vmem:[%s198 + $0xe8] sm:$0xff]
      %v240 = vld [vmem:[%s198 + $0xf0] sm:$0xff]
      %v241 = vld [vmem:[%s198 + $0xf8] sm:$0xff]
      %v242 = vld [vmem:[%s1] sm:$0x1]
      %v244 = vlaneseq
      %v245 = vshrl.u32 %v244, 7
      %v246 = vsub.s32 0, %v245
      %v247 = vrot.slane %v242, %v246
      %v249 = vmul.f32 %v210, %v247
      %v250 = vmul.f32 %v211, %v247
      %v251 = vmul.f32 %v212, %v247
      %v252 = vmul.f32 %v213, %v247
      %v253 = vmul.f32 %v214, %v247
      %v254 = vmul.f32 %v215, %v247
      %v255 = vmul.f32 %v216, %v247
      %v256 = vmul.f32 %v217, %v247
      %v257 = vmul.f32 %v218, %v247
      %v258 = vmul.f32 %v219, %v247
      %v259 = vmul.f32 %v220, %v247
      %v260 = vmul.f32 %v221, %v247
      %v261 = vmul.f32 %v222, %v247
      %v262 = vmul.f32 %v223, %v247
      %v263 = vmul.f32 %v224, %v247
      %v264 = vmul.f32 %v225, %v247
      %v265 = vmul.f32 %v226, %v247
      %v266 = vmul.f32 %v227, %v247
      %v267 = vmul.f32 %v228, %v247
      %v268 = vmul.f32 %v229, %v247
      %v269 = vmul.f32 %v230, %v247
      %v270 = vmul.f32 %v231, %v247
      %v271 = vmul.f32 %v232, %v247
      %v272 = vmul.f32 %v233, %v247
      %v273 = vmul.f32 %v234, %v247
      %v274 = vmul.f32 %v235, %v247
      %v275 = vmul.f32 %v236, %v247
      %v276 = vmul.f32 %v237, %v247
      %v277 = vmul.f32 %v238, %v247
      %v278 = vmul.f32 %v239, %v247
      %v279 = vmul.f32 %v240, %v247
      %v280 = vmul.f32 %v241, %v247
      %v281 = vld [vmem:[%s2] sm:$0x1]
      %v283 = vlaneseq
      %v284 = vshrl.u32 %v283, 7
      %v285 = vsub.s32 0, %v284
      %v286 = vrot.slane %v281, %v285
      %v288 = vadd.f32 %v249, %v286
      %v289 = vadd.f32 %v250, %v286
      %v290 = vadd.f32 %v251, %v286
      %v291 = vadd.f32 %v252, %v286
      %v292 = vadd.f32 %v253, %v286
      %v293 = vadd.f32 %v254, %v286
      %v294 = vadd.f32 %v255, %v286
      %v295 = vadd.f32 %v256, %v286
      %v296 = vadd.f32 %v257, %v286
      %v297 = vadd.f32 %v258, %v286
      %v298 = vadd.f32 %v259, %v286
      %v299 = vadd.f32 %v260, %v286
      %v300 = vadd.f32 %v261, %v286
      %v301 = vadd.f32 %v262, %v286
      %v302 = vadd.f32 %v263, %v286
      %v303 = vadd.f32 %v264, %v286
      %v304 = vadd.f32 %v265, %v286
      %v305 = vadd.f32 %v266, %v286
      %v306 = vadd.f32 %v267, %v286
      %v307 = vadd.f32 %v268, %v286
      %v308 = vadd.f32 %v269, %v286
      %v309 = vadd.f32 %v270, %v286
      %v310 = vadd.f32 %v271, %v286
      %v311 = vadd.f32 %v272, %v286
      %v312 = vadd.f32 %v273, %v286
      %v313 = vadd.f32 %v274, %v286
      %v314 = vadd.f32 %v275, %v286
      %v315 = vadd.f32 %v276, %v286
      %v316 = vadd.f32 %v277, %v286
      %v317 = vadd.f32 %v278, %v286
      %v318 = vadd.f32 %v279, %v286
      %v319 = vadd.f32 %v280, %v286
      %v320 = vxor.u32 %v288, 2147483648
      %v321 = vxor.u32 %v289, 2147483648
      %v322 = vxor.u32 %v290, 2147483648
      %v323 = vxor.u32 %v291, 2147483648
      %v324 = vxor.u32 %v292, 2147483648
      %v325 = vxor.u32 %v293, 2147483648
      %v326 = vxor.u32 %v294, 2147483648
      %v327 = vxor.u32 %v295, 2147483648
      %v328 = vxor.u32 %v296, 2147483648
      %v329 = vxor.u32 %v297, 2147483648
      %v330 = vxor.u32 %v298, 2147483648
      %v331 = vxor.u32 %v299, 2147483648
      %v332 = vxor.u32 %v300, 2147483648
      %v333 = vxor.u32 %v301, 2147483648
      %v334 = vxor.u32 %v302, 2147483648
      %v335 = vxor.u32 %v303, 2147483648
      %v336 = vxor.u32 %v304, 2147483648
      %v337 = vxor.u32 %v305, 2147483648
      %v338 = vxor.u32 %v306, 2147483648
      %v339 = vxor.u32 %v307, 2147483648
      %v340 = vxor.u32 %v308, 2147483648
      %v341 = vxor.u32 %v309, 2147483648
      %v342 = vxor.u32 %v310, 2147483648
      %v343 = vxor.u32 %v311, 2147483648
      %v344 = vxor.u32 %v312, 2147483648
      %v345 = vxor.u32 %v313, 2147483648
      %v346 = vxor.u32 %v314, 2147483648
      %v347 = vxor.u32 %v315, 2147483648
      %v348 = vxor.u32 %v316, 2147483648
      %v349 = vxor.u32 %v317, 2147483648
      %v350 = vxor.u32 %v318, 2147483648
      %v351 = vxor.u32 %v319, 2147483648
      %v352 = vmul.f32 %v320, 1.442695
      %v353 = vpow.pop %v352
      %v354 = vmul.f32 %v321, 1.442695
      %v355 = vpow.pop %v354
      %v356 = vmul.f32 %v322, 1.442695
      %v357 = vpow.pop %v356
      %v358 = vmul.f32 %v323, 1.442695
      %v359 = vpow.pop %v358
      %v360 = vmul.f32 %v324, 1.442695
      %v361 = vpow.pop %v360
      %v362 = vmul.f32 %v325, 1.442695
      %v363 = vpow.pop %v362
      %v364 = vmul.f32 %v326, 1.442695
      %v365 = vpow.pop %v364
      %v366 = vmul.f32 %v327, 1.442695
      %v367 = vpow.pop %v366
      %v368 = vmul.f32 %v328, 1.442695
      %v369 = vpow.pop %v368
      %v370 = vmul.f32 %v329, 1.442695
      %v371 = vpow.pop %v370
      %v372 = vmul.f32 %v330, 1.442695
      %v373 = vpow.pop %v372
      %v374 = vmul.f32 %v331, 1.442695
      %v375 = vpow.pop %v374
      %v376 = vmul.f32 %v332, 1.442695
      %v377 = vpow.pop %v376
      %v378 = vmul.f32 %v333, 1.442695
      %v379 = vpow.pop %v378
      %v380 = vmul.f32 %v334, 1.442695
      %v381 = vpow.pop %v380
      %v382 = vmul.f32 %v335, 1.442695
      %v383 = vpow.pop %v382
      %v384 = vmul.f32 %v336, 1.442695
      %v385 = vpow.pop %v384
      %v386 = vmul.f32 %v337, 1.442695
      %v387 = vpow.pop %v386
      %v388 = vmul.f32 %v338, 1.442695
      %v389 = vpow.pop %v388
      %v390 = vmul.f32 %v339, 1.442695
      %v391 = vpow.pop %v390
      %v392 = vmul.f32 %v340, 1.442695
      %v393 = vpow.pop %v392
      %v394 = vmul.f32 %v341, 1.442695
      %v395 = vpow.pop %v394
      %v396 = vmul.f32 %v342, 1.442695
      %v397 = vpow.pop %v396
      %v398 = vmul.f32 %v343, 1.442695
      %v399 = vpow.pop %v398
      %v400 = vmul.f32 %v344, 1.442695
      %v401 = vpow.pop %v400
      %v402 = vmul.f32 %v345, 1.442695
      %v403 = vpow.pop %v402
      %v404 = vmul.f32 %v346, 1.442695
      %v405 = vpow.pop %v404
      %v406 = vmul.f32 %v347, 1.442695
      %v407 = vpow.pop %v406
      %v408 = vmul.f32 %v348, 1.442695
      %v409 = vpow.pop %v408
      %v410 = vmul.f32 %v349, 1.442695
      %v411 = vpow.pop %v410
      %v412 = vmul.f32 %v350, 1.442695
      %v413 = vpow.pop %v412
      %v414 = vmul.f32 %v351, 1.442695
      %v415 = vpow.pop %v414
      %v416 = vadd.f32 %v353, 1.0
      %v417 = vadd.f32 %v355, 1.0
      %v418 = vadd.f32 %v357, 1.0
      %v419 = vadd.f32 %v359, 1.0
      %v420 = vadd.f32 %v361, 1.0
      %v421 = vadd.f32 %v363, 1.0
      %v422 = vadd.f32 %v365, 1.0
      %v423 = vadd.f32 %v367, 1.0
      %v424 = vadd.f32 %v369, 1.0
      %v425 = vadd.f32 %v371, 1.0
      %v426 = vadd.f32 %v373, 1.0
      %v427 = vadd.f32 %v375, 1.0
      %v428 = vadd.f32 %v377, 1.0
      %v429 = vadd.f32 %v379, 1.0
      %v430 = vadd.f32 %v381, 1.0
      %v431 = vadd.f32 %v383, 1.0
      %v432 = vadd.f32 %v385, 1.0
      %v433 = vadd.f32 %v387, 1.0
      %v434 = vadd.f32 %v389, 1.0
      %v435 = vadd.f32 %v391, 1.0
      %v436 = vadd.f32 %v393, 1.0
      %v437 = vadd.f32 %v395, 1.0
      %v438 = vadd.f32 %v397, 1.0
      %v439 = vadd.f32 %v399, 1.0
      %v440 = vadd.f32 %v401, 1.0
      %v441 = vadd.f32 %v403, 1.0
      %v442 = vadd.f32 %v405, 1.0
      %v443 = vadd.f32 %v407, 1.0
      %v444 = vadd.f32 %v409, 1.0
      %v445 = vadd.f32 %v411, 1.0
      %v446 = vadd.f32 %v413, 1.0
      %v447 = vadd.f32 %v415, 1.0
      %v448 = vrcp.pop %v416
      %v449 = vmul.f32 1.0, %v448
      %v450 = vrcp.pop %v417
      %v451 = vmul.f32 1.0, %v450
      %v452 = vrcp.pop %v418
      %v453 = vmul.f32 1.0, %v452
      %v454 = vrcp.pop %v419
      %v455 = vmul.f32 1.0, %v454
      %v456 = vrcp.pop %v420
      %v457 = vmul.f32 1.0, %v456
      %v458 = vrcp.pop %v421
      %v459 = vmul.f32 1.0, %v458
      %v460 = vrcp.pop %v422
      %v461 = vmul.f32 1.0, %v460
      %v462 = vrcp.pop %v423
      %v463 = vmul.f32 1.0, %v462
      %v464 = vrcp.pop %v424
      %v465 = vmul.f32 1.0, %v464
      %v466 = vrcp.pop %v425
      %v467 = vmul.f32 1.0, %v466
      %v468 = vrcp.pop %v426
      %v469 = vmul.f32 1.0, %v468
      %v470 = vrcp.pop %v427
      %v471 = vmul.f32 1.0, %v470
      %v472 = vrcp.pop %v428
      %v473 = vmul.f32 1.0, %v472
      %v474 = vrcp.pop %v429
      %v475 = vmul.f32 1.0, %v474
      %v476 = vrcp.pop %v430
      %v477 = vmul.f32 1.0, %v476
      %v478 = vrcp.pop %v431
      %v479 = vmul.f32 1.0, %v478
      %v480 = vrcp.pop %v432
      %v481 = vmul.f32 1.0, %v480
      %v482 = vrcp.pop %v433
      %v483 = vmul.f32 1.0, %v482
      %v484 = vrcp.pop %v434
      %v485 = vmul.f32 1.0, %v484
      %v486 = vrcp.pop %v435
      %v487 = vmul.f32 1.0, %v486
      %v488 = vrcp.pop %v436
      %v489 = vmul.f32 1.0, %v488
      %v490 = vrcp.pop %v437
      %v491 = vmul.f32 1.0, %v490
      %v492 = vrcp.pop %v438
      %v493 = vmul.f32 1.0, %v492
      %v494 = vrcp.pop %v439
      %v495 = vmul.f32 1.0, %v494
      %v496 = vrcp.pop %v440
      %v497 = vmul.f32 1.0, %v496
      %v498 = vrcp.pop %v441
      %v499 = vmul.f32 1.0, %v498
      %v500 = vrcp.pop %v442
      %v501 = vmul.f32 1.0, %v500
      %v502 = vrcp.pop %v443
      %v503 = vmul.f32 1.0, %v502
      %v504 = vrcp.pop %v444
      %v505 = vmul.f32 1.0, %v504
      %v506 = vrcp.pop %v445
      %v507 = vmul.f32 1.0, %v506
      %v508 = vrcp.pop %v446
      %v509 = vmul.f32 1.0, %v508
      %v510 = vrcp.pop %v447
      %v511 = vmul.f32 1.0, %v510
      %v512 = vmul.f32 %v288, %v449
      %v513 = vmul.f32 %v289, %v451
      %v514 = vmul.f32 %v290, %v453
      %v515 = vmul.f32 %v291, %v455
      %v516 = vmul.f32 %v292, %v457
      %v517 = vmul.f32 %v293, %v459
      %v518 = vmul.f32 %v294, %v461
      %v519 = vmul.f32 %v295, %v463
      %v520 = vmul.f32 %v296, %v465
      %v521 = vmul.f32 %v297, %v467
      %v522 = vmul.f32 %v298, %v469
      %v523 = vmul.f32 %v299, %v471
      %v524 = vmul.f32 %v300, %v473
      %v525 = vmul.f32 %v301, %v475
      %v526 = vmul.f32 %v302, %v477
      %v527 = vmul.f32 %v303, %v479
      %v528 = vmul.f32 %v304, %v481
      %v529 = vmul.f32 %v305, %v483
      %v530 = vmul.f32 %v306, %v485
      %v531 = vmul.f32 %v307, %v487
      %v532 = vmul.f32 %v308, %v489
      %v533 = vmul.f32 %v309, %v491
      %v534 = vmul.f32 %v310, %v493
      %v535 = vmul.f32 %v311, %v495
      %v536 = vmul.f32 %v312, %v497
      %v537 = vmul.f32 %v313, %v499
      %v538 = vmul.f32 %v314, %v501
      %v539 = vmul.f32 %v315, %v503
      %v540 = vmul.f32 %v316, %v505
      %v541 = vmul.f32 %v317, %v507
      %v542 = vmul.f32 %v318, %v509
      %v543 = vmul.f32 %v319, %v511
      %544 = vxpose.xlu0.b32.start [1/16] %v512, 128
      %545 = vxpose.xlu0.b32.cont [2/16] %v513, 128
      %546 = vxpose.xlu0.b32.cont [3/16] %v514, 128
      %547 = vxpose.xlu0.b32.cont [4/16] %v515, 128
      %548 = vxpose.xlu0.b32.cont [5/16] %v516, 128
      %549 = vxpose.xlu0.b32.cont [6/16] %v517, 128
      %550 = vxpose.xlu0.b32.cont [7/16] %v518, 128
      %551 = vxpose.xlu0.b32.cont [8/16] %v519, 128
      %552 = vxpose.xlu0.b32.cont [9/16] %v520, 128
      %553 = vxpose.xlu0.b32.cont [10/16] %v521, 128
      %554 = vxpose.xlu0.b32.cont [11/16] %v522, 128
      %555 = vxpose.xlu0.b32.cont [12/16] %v523, 128
      %556 = vxpose.xlu0.b32.cont [13/16] %v524, 128
      %557 = vxpose.xlu0.b32.cont [14/16] %v525, 128
      %558 = vxpose.xlu0.b32.cont [15/16] %v526, 128
      %559 = vxpose.xlu0.b32.end [16/16] %v527, 128
      %v560 = vpop.trf.xlu0
      %v561 = vpop.trf.xlu0
      %v562 = vpop.trf.xlu0
      %v563 = vpop.trf.xlu0
      %v564 = vpop.trf.xlu0
      %v565 = vpop.trf.xlu0
      %v566 = vpop.trf.xlu0
      %v567 = vpop.trf.xlu0
      %v568 = vpop.trf.xlu0
      %v569 = vpop.trf.xlu0
      %v570 = vpop.trf.xlu0
      %v571 = vpop.trf.xlu0
      %v572 = vpop.trf.xlu0
      %v573 = vpop.trf.xlu0
      %v574 = vpop.trf.xlu0
      %v575 = vpop.trf.xlu0
      %576 = vxpose.xlu0.b32.start [1/16] %v528, 128
      %577 = vxpose.xlu0.b32.cont [2/16] %v529, 128
      %578 = vxpose.xlu0.b32.cont [3/16] %v530, 128
      %579 = vxpose.xlu0.b32.cont [4/16] %v531, 128
      %580 = vxpose.xlu0.b32.cont [5/16] %v532, 128
      %581 = vxpose.xlu0.b32.cont [6/16] %v533, 128
      %582 = vxpose.xlu0.b32.cont [7/16] %v534, 128
      %583 = vxpose.xlu0.b32.cont [8/16] %v535, 128
      %584 = vxpose.xlu0.b32.cont [9/16] %v536, 128
      %585 = vxpose.xlu0.b32.cont [10/16] %v537, 128
      %586 = vxpose.xlu0.b32.cont [11/16] %v538, 128
      %587 = vxpose.xlu0.b32.cont [12/16] %v539, 128
      %588 = vxpose.xlu0.b32.cont [13/16] %v540, 128
      %589 = vxpose.xlu0.b32.cont [14/16] %v541, 128
      %590 = vxpose.xlu0.b32.cont [15/16] %v542, 128
      %591 = vxpose.xlu0.b32.end [16/16] %v543, 128
      %v592 = vpop.trf.xlu0
      %v593 = vpop.trf.xlu0
      %v594 = vpop.trf.xlu0
      %v595 = vpop.trf.xlu0
      %v596 = vpop.trf.xlu0
      %v597 = vpop.trf.xlu0
      %v598 = vpop.trf.xlu0
      %v599 = vpop.trf.xlu0
      %v600 = vpop.trf.xlu0
      %v601 = vpop.trf.xlu0
      %v602 = vpop.trf.xlu0
      %v603 = vpop.trf.xlu0
      %v604 = vpop.trf.xlu0
      %v605 = vpop.trf.xlu0
      %v606 = vpop.trf.xlu0
      %v607 = vpop.trf.xlu0
      %608 = vst [vmem:[%s208] sm:$0xff] %v560
      %609 = vst [vmem:[%s208 + $0x8] sm:$0xff] %v592
      %s610 = smul.u32 2, %s19
      %p611 = scmp.lt.s32.totalorder %s18, 1
      %s612 = scalar_select %p611, %s18, 1
      %p613 = scmp.lt.s32.totalorder %s610, 1
      %s614 = scalar_select %p613, %s610, 1
      %s615 = smul.addr %s612, 2
      %s616 = sadd.s32 %s614, %s615
      %s617 = smul.addr %s616, 8
      %s618 = scalar_lea.vmem %s3, %s617
      // Predicated region
      $region33: #{conv_block_forward.3} parent=31 // pred_check
        %p619 = pneg %p116
      $region34: #{conv_block_forward.3} parent=31 // pred_check_branch
        %621 = sbr.rel (%p619) target = $region36
      $region35: #{conv_block_forward.3} parent=31 // pred_region
        %s622 = smul.u32 2, %s19
      $region36: #{conv_block_forward.3} parent=31 // pred_fallthru
        _
    $region32: #{conv_block_forward.3} parent=5 // pred_fallthru
      _
    %p623 = scmp.le.s32.totalorder 2, %s9
    // Predicated region
    $region37: #{conv_block_forward.3} parent=5 // pred_check
      %p624 = pneg %p623
    $region38: #{conv_block_forward.3} parent=5 // pred_check_branch
      %626 = sbr.rel (%p624) target = $region40
    $region39: #{conv_block_forward.3} parent=5 // pred_region
      %s627 = ssub.s32 %s9, 2
      // Predicated region
      $region41: #{conv_block_forward.3} parent=39 // pred_check
        %p628 = pneg %p122
      $region42: #{conv_block_forward.3} parent=39 // pred_check_branch
        %630 = sbr.rel (%p628) target = $region44
      $region43: #{conv_block_forward.3} parent=39 // pred_region
        %s631 = smul.u32 2, %s21
        %p632 = scmp.lt.s32.totalorder %s20, 1
        %s633 = scalar_select %p632, %s20, 1
        %p634 = scmp.lt.s32.totalorder %s631, 1
        %s635 = scalar_select %p634, %s631, 1
        %s636 = smul.addr %s633, 2
        %s637 = sadd.s32 %s635, %s636
        %s638 = smul.addr %s637, 8
        %s639 = scalar_lea.vmem %s3, %s638
      $region44: #{conv_block_forward.3} parent=39 // pred_fallthru
        _
    $region40: #{conv_block_forward.3} parent=5 // pred_fallthru
      _
  $region6: #{conv_block_forward.3} parent=0 // loop_footer
    %s13 = sadd.s32 1, %s9
  $region7: #{conv_block_forward.3} parent=0 // loop_footer_branch
    %8 = sbr.rel target = $region3
  $region8: #{conv_block_forward.3} parent=0 // loop_exit
    _

// kernel: conv_block_forward.2
$region0: #{conv_block_forward.2}
  #allocation0 [shape = 'u32[]', space=smem, size = 0x4, offset = 0x4, fixed_abs, tag = 'smem constant byte address 0x4 - core index']
  #allocation1 [shape = 'u32[144,128]{1,0:T(1,128)}', space=vmem, size = 0x12000, scoped, tag = 'internal scratch']
  %s0 = inlined_call_operand.vmem [shape: f32[512,4], index: 0, kind: input, shape index: {}]
  %s1 = inlined_call_operand.vmem [shape: f32[4,128], index: 1, kind: input, shape index: {}]
  %s2 = inlined_call_operand.vmem [shape: f32[512,128], index: 2, kind: output, shape index: {0}]
  %s3 = inlined_call_operand.vmem [shape: f32[1,8,128], index: 3, kind: output, shape index: {1}]
  %s4 = inlined_call_operand.vmem [shape: f32[1,8,128], index: 4, kind: output, shape index: {2}]
  %5 = xla_tuple %s2, %s3, %s4
  %s6 = sld [smem:[#allocation0]]
  $region34: #{conv_block_forward.2} parent=0
    _
  %s8 = ssub.s32 1, %s6
  %s9 = scalar_select 0, %s8, %s6
  // Predicated region
  $region2: #{conv_block_forward.2} parent=0 // pred_check
    _
  $region3: #{conv_block_forward.2} parent=0 // pred_check_branch
    %11 = sbr.rel (0) target = $region5
  $region4: #{conv_block_forward.2} parent=0 // pred_region
    _
  $region5: #{conv_block_forward.2} parent=0 // pred_fallthru
    _
  // Predicated region
  $region6: #{conv_block_forward.2} parent=0 // pred_check
    _
  $region7: #{conv_block_forward.2} parent=0 // pred_check_branch
    %13 = sbr.rel (0) target = $region9
  $region8: #{conv_block_forward.2} parent=0 // pred_region
    _
  $region9: #{conv_block_forward.2} parent=0 // pred_fallthru
    _
  %v14 = vld [vmem:[%s0] sm:$0xff]
  %v15 = vld [vmem:[%s0 + $0x8] sm:$0xff]
  %v16 = vld [vmem:[%s0 + $0x10] sm:$0xff]
  %v17 = vld [vmem:[%s0 + $0x18] sm:$0xff]
  %v18 = vld [vmem:[%s0 + $0x20] sm:$0xff]
  %v19 = vld [vmem:[%s0 + $0x28] sm:$0xff]
  %v20 = vld [vmem:[%s0 + $0x30] sm:$0xff]
  %v21 = vld [vmem:[%s0 + $0x38] sm:$0xff]
  %v22 = vld [vmem:[%s0 + $0x40] sm:$0xff]
  %v23 = vld [vmem:[%s0 + $0x48] sm:$0xff]
  %v24 = vld [vmem:[%s0 + $0x50] sm:$0xff]
  %v25 = vld [vmem:[%s0 + $0x58] sm:$0xff]
  %v26 = vld [vmem:[%s0 + $0x60] sm:$0xff]
  %v27 = vld [vmem:[%s0 + $0x68] sm:$0xff]
  %v28 = vld [vmem:[%s0 + $0x70] sm:$0xff]
  %v29 = vld [vmem:[%s0 + $0x78] sm:$0xff]
  %v30 = vld [vmem:[%s0 + $0x80] sm:$0xff]
  %v31 = vld [vmem:[%s0 + $0x88] sm:$0xff]
  %v32 = vld [vmem:[%s0 + $0x90] sm:$0xff]
  %v33 = vld [vmem:[%s0 + $0x98] sm:$0xff]
  %v34 = vld [vmem:[%s0 + $0xa0] sm:$0xff]
  %v35 = vld [vmem:[%s0 + $0xa8] sm:$0xff]
  %v36 = vld [vmem:[%s0 + $0xb0] sm:$0xff]
  %v37 = vld [vmem:[%s0 + $0xb8] sm:$0xff]
  %v38 = vld [vmem:[%s0 + $0xc0] sm:$0xff]
  %v39 = vld [vmem:[%s0 + $0xc8] sm:$0xff]
  %v40 = vld [vmem:[%s0 + $0xd0] sm:$0xff]
  %v41 = vld [vmem:[%s0 + $0xd8] sm:$0xff]
  %v42 = vld [vmem:[%s0 + $0xe0] sm:$0xff]
  %v43 = vld [vmem:[%s0 + $0xe8] sm:$0xff]
  %v44 = vld [vmem:[%s0 + $0xf0] sm:$0xff]
  %v45 = vld [vmem:[%s0 + $0xf8] sm:$0xff]
  %v46 = vld [vmem:[%s0 + $0x100] sm:$0xff]
  %v47 = vld [vmem:[%s0 + $0x108] sm:$0xff]
  %v48 = vld [vmem:[%s0 + $0x110] sm:$0xff]
  %v49 = vld [vmem:[%s0 + $0x118] sm:$0xff]
  %v50 = vld [vmem:[%s0 + $0x120] sm:$0xff]
  %v51 = vld [vmem:[%s0 + $0x128] sm:$0xff]
  %v52 = vld [vmem:[%s0 + $0x130] sm:$0xff]
  %v53 = vld [vmem:[%s0 + $0x138] sm:$0xff]
  %v54 = vld [vmem:[%s0 + $0x140] sm:$0xff]
  %v55 = vld [vmem:[%s0 + $0x148] sm:$0xff]
  %v56 = vld [vmem:[%s0 + $0x150] sm:$0xff]
  %v57 = vld [vmem:[%s0 + $0x158] sm:$0xff]
  %v58 = vld [vmem:[%s0 + $0x160] sm:$0xff]
  %v59 = vld [vmem:[%s0 + $0x168] sm:$0xff]
  %v60 = vld [vmem:[%s0 + $0x170] sm:$0xff]
  %v61 = vld [vmem:[%s0 + $0x178] sm:$0xff]
  %v62 = vld [vmem:[%s0 + $0x180] sm:$0xff]
  %v63 = vld [vmem:[%s0 + $0x188] sm:$0xff]
  %v64 = vld [vmem:[%s0 + $0x190] sm:$0xff]
  %v65 = vld [vmem:[%s0 + $0x198] sm:$0xff]
  %v66 = vld [vmem:[%s0 + $0x1a0] sm:$0xff]
  %v67 = vld [vmem:[%s0 + $0x1a8] sm:$0xff]
  %v68 = vld [vmem:[%s0 + $0x1b0] sm:$0xff]
  %v69 = vld [vmem:[%s0 + $0x1b8] sm:$0xff]
  %v70 = vld [vmem:[%s0 + $0x1c0] sm:$0xff]
  %v71 = vld [vmem:[%s0 + $0x1c8] sm:$0xff]
  %v72 = vld [vmem:[%s0 + $0x1d0] sm:$0xff]
  %v73 = vld [vmem:[%s0 + $0x1d8] sm:$0xff]
  %v74 = vld [vmem:[%s0 + $0x1e0] sm:$0xff]
  %v75 = vld [vmem:[%s0 + $0x1e8] sm:$0xff]
  %v76 = vld [vmem:[%s0 + $0x1f0] sm:$0xff]
  %v77 = vld [vmem:[%s0 + $0x1f8] sm:$0xff]
  %v78 = vld [vmem:[%s1] sm:$0xf]
  %vm79 = vcmask 31744
  %v81 = vsel %vm79, %v14, 0
  %v84 = vsel %vm79, %v15, 0
  %v87 = vsel %vm79, %v16, 0
  %v90 = vsel %vm79, %v17, 0
  %v93 = vsel %vm79, %v18, 0
  %v96 = vsel %vm79, %v19, 0
  %v99 = vsel %vm79, %v20, 0
  %v102 = vsel %vm79, %v21, 0
  %v105 = vsel %vm79, %v22, 0
  %v108 = vsel %vm79, %v23, 0
  %v111 = vsel %vm79, %v24, 0
  %v114 = vsel %vm79, %v25, 0
  %v117 = vsel %vm79, %v26, 0
  %v120 = vsel %vm79, %v27, 0
  %v123 = vsel %vm79, %v28, 0
  %v126 = vsel %vm79, %v29, 0
  %v129 = vsel %vm79, %v30, 0
  %v132 = vsel %vm79, %v31, 0
  %v135 = vsel %vm79, %v32, 0
  %v138 = vsel %vm79, %v33, 0
  %v141 = vsel %vm79, %v34, 0
  %v144 = vsel %vm79, %v35, 0
  %v147 = vsel %vm79, %v36, 0
  %v150 = vsel %vm79, %v37, 0
  %v153 = vsel %vm79, %v38, 0
  %v156 = vsel %vm79, %v39, 0
  %v159 = vsel %vm79, %v40, 0
  %v162 = vsel %vm79, %v41, 0
  %v165 = vsel %vm79, %v42, 0
  %v168 = vsel %vm79, %v43, 0
  %v171 = vsel %vm79, %v44, 0
  %v174 = vsel %vm79, %v45, 0
  %v177 = vsel %vm79, %v46, 0
  %v180 = vsel %vm79, %v47, 0
  %v183 = vsel %vm79, %v48, 0
  %v186 = vsel %vm79, %v49, 0
  %v189 = vsel %vm79, %v50, 0
  %v192 = vsel %vm79, %v51, 0
  %v195 = vsel %vm79, %v52, 0
  %v198 = vsel %vm79, %v53, 0
  %v201 = vsel %vm79, %v54, 0
  %v204 = vsel %vm79, %v55, 0
  %v207 = vsel %vm79, %v56, 0
  %v210 = vsel %vm79, %v57, 0
  %v213 = vsel %vm79, %v58, 0
  %v216 = vsel %vm79, %v59, 0
  %v219 = vsel %vm79, %v60, 0
  %v222 = vsel %vm79, %v61, 0
  %v225 = vsel %vm79, %v62, 0
  %v228 = vsel %vm79, %v63, 0
  %v231 = vsel %vm79, %v64, 0
  %v234 = vsel %vm79, %v65, 0
  %v237 = vsel %vm79, %v66, 0
  %v240 = vsel %vm79, %v67, 0
  %v243 = vsel %vm79, %v68, 0
  %v246 = vsel %vm79, %v69, 0
  %v249 = vsel %vm79, %v70, 0
  %v252 = vsel %vm79, %v71, 0
  %v255 = vsel %vm79, %v72, 0
  %v258 = vsel %vm79, %v73, 0
  %v261 = vsel %vm79, %v74, 0
  %v264 = vsel %vm79, %v75, 0
  %v267 = vsel %vm79, %v76, 0
  %v270 = vsel %vm79, %v77, 0
  %vm272 = vcmask 1043456
  %v274 = vsel %vm272, %v78, 0
  %276 = vmatprep.subr.mxu0 0.0
  %277 = vmatpush1.msra.mxu0 0.0
  %278 = vmatprep.subr.mxu0 0.0
  %279 = vmatpush1.msra.mxu0 0.0
  %280 = vmatprep.subr.mxu0 0.0
  %281 = vmatpush1.msra.mxu0 0.0
  %282 = vmatprep.subr.mxu0 0.0
  %283 = vmatpush1.msra.mxu0 0.0
  %284 = vmatprep.subr.mxu0 0.0
  %285 = vmatpush1.msra.mxu0 0.0
  %286 = vmatprep.subr.mxu0 0.0
  %287 = vmatpush1.msra.mxu0 0.0
  %288 = vmatprep.subr.mxu0 0.0
  %289 = vmatpush1.msra.mxu0 0.0
  %290 = vmatprep.subr.mxu0 0.0
  %291 = vmatpush1.msra.mxu0 0.0
  %292 = vmatprep.subr.mxu0 0.0
  %293 = vmatpush1.msra.mxu0 0.0
  %294 = vmatprep.subr.mxu0 0.0
  %295 = vmatpush1.msra.mxu0 0.0
  %296 = vmatprep.subr.mxu0 0.0
  %297 = vmatpush1.msra.mxu0 0.0
  %298 = vmatprep.subr.mxu0 0.0
  %299 = vmatpush1.msra.mxu0 0.0
  %300 = vmatprep.subr.mxu0 0.0
  %301 = vmatpush1.msra.mxu0 0.0
  %302 = vmatprep.subr.mxu0 0.0
  %303 = vmatpush1.msra.mxu0 0.0
  %304 = vmatprep.subr.mxu0 0.0
  %305 = vmatpush1.msra.mxu0 0.0
  %306 = vmatprep.subr.mxu0 0.0
  %307 = vmatpush1.msra.mxu0 %v274
  %308 = vmatprep.subr.mxu0 0.0
  %309 = vmatpush2.msra.mxu0 0.0
  %310 = vmatprep.subr.mxu0 0.0
  %311 = vmatpush2.msra.mxu0 0.0
  %312 = vmatprep.subr.mxu0 0.0
  %313 = vmatpush2.msra.mxu0 0.0
  %314 = vmatprep.subr.mxu0 0.0
  %315 = vmatpush2.msra.mxu0 0.0
  %316 = vmatprep.subr.mxu0 0.0
  %317 = vmatpush2.msra.mxu0 0.0
  %318 = vmatprep.subr.mxu0 0.0
  %319 = vmatpush2.msra.mxu0 0.0
  %320 = vmatprep.subr.mxu0 0.0
  %321 = vmatpush2.msra.mxu0 0.0
  %322 = vmatprep.subr.mxu0 0.0
  %323 = vmatpush2.msra.mxu0 0.0
  %324 = vmatprep.subr.mxu0 0.0
  %325 = vmatpush2.msra.mxu0 0.0
  %326 = vmatprep.subr.mxu0 0.0
  %327 = vmatpush2.msra.mxu0 0.0
  %328 = vmatprep.subr.mxu0 0.0
  %329 = vmatpush2.msra.mxu0 0.0
  %330 = vmatprep.subr.mxu0 0.0
  %331 = vmatpush2.msra.mxu0 0.0
  %332 = vmatprep.subr.mxu0 0.0
  %333 = vmatpush2.msra.mxu0 0.0
  %334 = vmatprep.subr.mxu0 0.0
  %335 = vmatpush2.msra.mxu0 0.0
  %336 = vmatprep.subr.mxu0 0.0
  %337 = vmatpush2.msra.mxu0 0.0
  %338 = vmatprep.subr.mxu0 0.0
  %339 = vmatpush2.msra.mxu0 0.0
  %340 = vmatprep.mubr.f32.mxu0 0.0
  %341 = vmatmul.mubr.f32.gmra.mxu0 %v81
  %v342 = vpop.f32.mrf.mxu0
  %v343 = vadd.f32 0.0, %v342
  %v344 = vpop.f32.mrf.mxu0
  %345 = vmatprep.mubr.f32.mxu0 0.0
  %346 = vmatmul.mubr.f32.gmra.mxu0 %v84
  %v347 = vpop.f32.mrf.mxu0
  %v348 = vadd.f32 0.0, %v347
  %v349 = vpop.f32.mrf.mxu0
  %350 = vmatprep.mubr.f32.mxu0 0.0
  %351 = vmatmul.mubr.f32.gmra.mxu0 %v87
  %v352 = vpop.f32.mrf.mxu0
  %v353 = vadd.f32 0.0, %v352
  %v354 = vpop.f32.mrf.mxu0
  %355 = vmatprep.mubr.f32.mxu0 0.0
  %356 = vmatmul.mubr.f32.gmra.mxu0 %v90
  %v357 = vpop.f32.mrf.mxu0
  %v358 = vadd.f32 0.0, %v357
  %v359 = vpop.f32.mrf.mxu0
  %360 = vmatprep.mubr.f32.mxu0 0.0
  %361 = vmatmul.mubr.f32.gmra.mxu0 %v93
  %v362 = vpop.f32.mrf.mxu0
  %v363 = vadd.f32 0.0, %v362
  %v364 = vpop.f32.mrf.mxu0
  %365 = vmatprep.mubr.f32.mxu0 0.0
  %366 = vmatmul.mubr.f32.gmra.mxu0 %v96
  %v367 = vpop.f32.mrf.mxu0
  %v368 = vadd.f32 0.0, %v367
  %v369 = vpop.f32.mrf.mxu0
  %370 = vmatprep.mubr.f32.mxu0 0.0
  %371 = vmatmul.mubr.f32.gmra.mxu0 %v99
  %v372 = vpop.f32.mrf.mxu0
  %v373 = vadd.f32 0.0, %v372
  %v374 = vpop.f32.mrf.mxu0
  %375 = vmatprep.mubr.f32.mxu0 0.0
  %376 = vmatmul.mubr.f32.gmra.mxu0 %v102
  %v377 = vpop.f32.mrf.mxu0
  %v378 = vadd.f32 0.0, %v377
  %v379 = vpop.f32.mrf.mxu0
  %380 = vmatprep.mubr.f32.mxu0 0.0
  %381 = vmatmul.mubr.f32.gmra.mxu0 %v105
  %v382 = vpop.f32.mrf.mxu0
  %v383 = vadd.f32 0.0, %v382
  %v384 = vpop.f32.mrf.mxu0
  %385 = vmatprep.mubr.f32.mxu0 0.0
  %386 = vmatmul.mubr.f32.gmra.mxu0 %v108
  %v387 = vpop.f32.mrf.mxu0
  %v388 = vadd.f32 0.0, %v387
  %v389 = vpop.f32.mrf.mxu0
  %390 = vmatprep.mubr.f32.mxu0 0.0
  %391 = vmatmul.mubr.f32.gmra.mxu0 %v111
  %v392 = vpop.f32.mrf.mxu0
  %v393 = vadd.f32 0.0, %v392
  %v394 = vpop.f32.mrf.mxu0
  %395 = vmatprep.mubr.f32.mxu0 0.0
  %396 = vmatmul.mubr.f32.gmra.mxu0 %v114
  %v397 = vpop.f32.mrf.mxu0
  %v398 = vadd.f32 0.0, %v397
  %v399 = vpop.f32.mrf.mxu0
  %400 = vmatprep.mubr.f32.mxu0 0.0
  %401 = vmatmul.mubr.f32.gmra.mxu0 %v117
  %v402 = vpop.f32.mrf.mxu0
  %v403 = vadd.f32 0.0, %v402
  %v404 = vpop.f32.mrf.mxu0
  %405 = vmatprep.mubr.f32.mxu0 0.0
  %406 = vmatmul.mubr.f32.gmra.mxu0 %v120
  %v407 = vpop.f32.mrf.mxu0
  %v408 = vadd.f32 0.0, %v407
  %v409 = vpop.f32.mrf.mxu0
  %410 = vmatprep.mubr.f32.mxu0 0.0
  %411 = vmatmul.mubr.f32.gmra.mxu0 %v123
  %v412 = vpop.f32.mrf.mxu0
  %v413 = vadd.f32 0.0, %v412
  %v414 = vpop.f32.mrf.mxu0
  %415 = vmatprep.mubr.f32.mxu0 0.0
  %416 = vmatmul.mubr.f32.gmra.mxu0 %v126
  %v417 = vpop.f32.mrf.mxu0
  %v418 = vadd.f32 0.0, %v417
  %v419 = vpop.f32.mrf.mxu0
  %420 = vmatprep.mubr.f32.mxu0 0.0
  %421 = vmatmul.mubr.f32.gmra.mxu0 %v129
  %v422 = vpop.f32.mrf.mxu0
  %v423 = vadd.f32 0.0, %v422
  %v424 = vpop.f32.mrf.mxu0
  %425 = vmatprep.mubr.f32.mxu0 0.0
  %426 = vmatmul.mubr.f32.gmra.mxu0 %v132
  %v427 = vpop.f32.mrf.mxu0
  %v428 = vadd.f32 0.0, %v427
  %v429 = vpop.f32.mrf.mxu0
  %430 = vmatprep.mubr.f32.mxu0 0.0
  %431 = vmatmul.mubr.f32.gmra.mxu0 %v135
  %v432 = vpop.f32.mrf.mxu0
  %v433 = vadd.f32 0.0, %v432
  %v434 = vpop.f32.mrf.mxu0
  %435 = vmatprep.mubr.f32.mxu0 0.0
  %436 = vmatmul.mubr.f32.gmra.mxu0 %v138
  %v437 = vpop.f32.mrf.mxu0
  %v438 = vadd.f32 0.0, %v437
  %v439 = vpop.f32.mrf.mxu0
  %440 = vmatprep.mubr.f32.mxu0 0.0
  %441 = vmatmul.mubr.f32.gmra.mxu0 %v141
  %v442 = vpop.f32.mrf.mxu0
  %v443 = vadd.f32 0.0, %v442
  %v444 = vpop.f32.mrf.mxu0
  %445 = vmatprep.mubr.f32.mxu0 0.0
  %446 = vmatmul.mubr.f32.gmra.mxu0 %v144
  %v447 = vpop.f32.mrf.mxu0
  %v448 = vadd.f32 0.0, %v447
  %v449 = vpop.f32.mrf.mxu0
  %450 = vmatprep.mubr.f32.mxu0 0.0
  %451 = vmatmul.mubr.f32.gmra.mxu0 %v147
  %v452 = vpop.f32.mrf.mxu0
  %v453 = vadd.f32 0.0, %v452
  %v454 = vpop.f32.mrf.mxu0
  %455 = vmatprep.mubr.f32.mxu0 0.0
  %456 = vmatmul.mubr.f32.gmra.mxu0 %v150
  %v457 = vpop.f32.mrf.mxu0
  %v458 = vadd.f32 0.0, %v457
  %v459 = vpop.f32.mrf.mxu0
  %460 = vmatprep.mubr.f32.mxu0 0.0
  %461 = vmatmul.mubr.f32.gmra.mxu0 %v153
  %v462 = vpop.f32.mrf.mxu0
  %v463 = vadd.f32 0.0, %v462
  %v464 = vpop.f32.mrf.mxu0
  %465 = vmatprep.mubr.f32.mxu0 0.0
  %466 = vmatmul.mubr.f32.gmra.mxu0 %v156
  %v467 = vpop.f32.mrf.mxu0
  %v468 = vadd.f32 0.0, %v467
  %v469 = vpop.f32.mrf.mxu0
  %470 = vmatprep.mubr.f32.mxu0 0.0
  %471 = vmatmul.mubr.f32.gmra.mxu0 %v159
  %v472 = vpop.f32.mrf.mxu0
  %v473 = vadd.f32 0.0, %v472
  %v474 = vpop.f32.mrf.mxu0
  %475 = vmatprep.mubr.f32.mxu0 0.0
  %476 = vmatmul.mubr.f32.gmra.mxu0 %v162
  %v477 = vpop.f32.mrf.mxu0
  %v478 = vadd.f32 0.0, %v477
  %v479 = vpop.f32.mrf.mxu0
  %480 = vmatprep.mubr.f32.mxu0 0.0
  %481 = vmatmul.mubr.f32.gmra.mxu0 %v165
  %v482 = vpop.f32.mrf.mxu0
  %v483 = vadd.f32 0.0, %v482
  %v484 = vpop.f32.mrf.mxu0
  %485 = vmatprep.mubr.f32.mxu0 0.0
  %486 = vmatmul.mubr.f32.gmra.mxu0 %v168
  %v487 = vpop.f32.mrf.mxu0
  %v488 = vadd.f32 0.0, %v487
  %v489 = vpop.f32.mrf.mxu0
  %490 = vmatprep.mubr.f32.mxu0 0.0
  %491 = vmatmul.mubr.f32.gmra.mxu0 %v171
  %v492 = vpop.f32.mrf.mxu0
  %v493 = vadd.f32 0.0, %v492
  %v494 = vpop.f32.mrf.mxu0
  %495 = vmatprep.mubr.f32.mxu0 0.0
  %496 = vmatmul.mubr.f32.gmra.mxu0 %v174
  %v497 = vpop.f32.mrf.mxu0
  %v498 = vadd.f32 0.0, %v497
  %v499 = vpop.f32.mrf.mxu0
  %500 = vmatprep.mubr.f32.mxu0 0.0
  %501 = vmatmul.mubr.f32.gmra.mxu0 %v177
  %v502 = vpop.f32.mrf.mxu0
  %v503 = vadd.f32 0.0, %v502
  %v504 = vpop.f32.mrf.mxu0
  %505 = vmatprep.mubr.f32.mxu0 0.0
  %506 = vmatmul.mubr.f32.gmra.mxu0 %v180
  %v507 = vpop.f32.mrf.mxu0
  %v508 = vadd.f32 0.0, %v507
  %v509 = vpop.f32.mrf.mxu0
  %510 = vmatprep.mubr.f32.mxu0 0.0
  %511 = vmatmul.mubr.f32.gmra.mxu0 %v183
  %v512 = vpop.f32.mrf.mxu0
  %v513 = vadd.f32 0.0, %v512
  %v514 = vpop.f32.mrf.mxu0
  %515 = vmatprep.mubr.f32.mxu0 0.0
  %516 = vmatmul.mubr.f32.gmra.mxu0 %v186
  %v517 = vpop.f32.mrf.mxu0
  %v518 = vadd.f32 0.0, %v517
  %v519 = vpop.f32.mrf.mxu0
  %520 = vmatprep.mubr.f32.mxu0 0.0
  %521 = vmatmul.mubr.f32.gmra.mxu0 %v189
  %v522 = vpop.f32.mrf.mxu0
  %v523 = vadd.f32 0.0, %v522
  %v524 = vpop.f32.mrf.mxu0
  %525 = vmatprep.mubr.f32.mxu0 0.0
  %526 = vmatmul.mubr.f32.gmra.mxu0 %v192
  %v527 = vpop.f32.mrf.mxu0
  %v528 = vadd.f32 0.0, %v527
  %v529 = vpop.f32.mrf.mxu0
  %530 = vmatprep.mubr.f32.mxu0 0.0
  %531 = vmatmul.mubr.f32.gmra.mxu0 %v195
  %v532 = vpop.f32.mrf.mxu0
  %v533 = vadd.f32 0.0, %v532
  %v534 = vpop.f32.mrf.mxu0
  %535 = vmatprep.mubr.f32.mxu0 0.0
  %536 = vmatmul.mubr.f32.gmra.mxu0 %v198
  %v537 = vpop.f32.mrf.mxu0
  %v538 = vadd.f32 0.0, %v537
  %v539 = vpop.f32.mrf.mxu0
  %540 = vmatprep.mubr.f32.mxu0 0.0
  %541 = vmatmul.mubr.f32.gmra.mxu0 %v201
  %v542 = vpop.f32.mrf.mxu0
  %v543 = vadd.f32 0.0, %v542
  %v544 = vpop.f32.mrf.mxu0
  %545 = vmatprep.mubr.f32.mxu0 0.0
  %546 = vmatmul.mubr.f32.gmra.mxu0 %v204
  %v547 = vpop.f32.mrf.mxu0
  %v548 = vadd.f32 0.0, %v547
  %v549 = vpop.f32.mrf.mxu0
  %550 = vmatprep.mubr.f32.mxu0 0.0
  %551 = vmatmul.mubr.f32.gmra.mxu0 %v207
  %v552 = vpop.f32.mrf.mxu0
  %v553 = vadd.f32 0.0, %v552
  %v554 = vpop.f32.mrf.mxu0
  %555 = vmatprep.mubr.f32.mxu0 0.0
  %556 = vmatmul.mubr.f32.gmra.mxu0 %v210
  %v557 = vpop.f32.mrf.mxu0
  %v558 = vadd.f32 0.0, %v557
  %v559 = vpop.f32.mrf.mxu0
  %560 = vmatprep.mubr.f32.mxu0 0.0
  %561 = vmatmul.mubr.f32.gmra.mxu0 %v213
  %v562 = vpop.f32.mrf.mxu0
  %v563 = vadd.f32 0.0, %v562
  %v564 = vpop.f32.mrf.mxu0
  %565 = vmatprep.mubr.f32.mxu0 0.0
  %566 = vmatmul.mubr.f32.gmra.mxu0 %v216
  %v567 = vpop.f32.mrf.mxu0
  %v568 = vadd.f32 0.0, %v567
  %v569 = vpop.f32.mrf.mxu0
  %570 = vmatprep.mubr.f32.mxu0 0.0
  %571 = vmatmul.mubr.f32.gmra.mxu0 %v219
  %v572 = vpop.f32.mrf.mxu0
  %v573 = vadd.f32 0.0, %v572
  %v574 = vpop.f32.mrf.mxu0
  %575 = vmatprep.mubr.f32.mxu0 0.0
  %576 = vmatmul.mubr.f32.gmra.mxu0 %v222
  %v577 = vpop.f32.mrf.mxu0
  %v578 = vadd.f32 0.0, %v577
  %v579 = vpop.f32.mrf.mxu0
  %580 = vmatprep.mubr.f32.mxu0 0.0
  %581 = vmatmul.mubr.f32.gmra.mxu0 %v225
  %v582 = vpop.f32.mrf.mxu0
  %v583 = vadd.f32 0.0, %v582
  %v584 = vpop.f32.mrf.mxu0
  %585 = vmatprep.mubr.f32.mxu0 0.0
  %586 = vmatmul.mubr.f32.gmra.mxu0 %v228
  %v587 = vpop.f32.mrf.mxu0
  %v588 = vadd.f32 0.0, %v587
  %v589 = vpop.f32.mrf.mxu0
  %590 = vmatprep.mubr.f32.mxu0 0.0
  %591 = vmatmul.mubr.f32.gmra.mxu0 %v231
  %v592 = vpop.f32.mrf.mxu0
  %v593 = vadd.f32 0.0, %v592
  %v594 = vpop.f32.mrf.mxu0
  %595 = vmatprep.mubr.f32.mxu0 0.0
  %596 = vmatmul.mubr.f32.gmra.mxu0 %v234
  %v597 = vpop.f32.mrf.mxu0
  %v598 = vadd.f32 0.0, %v597
  %v599 = vpop.f32.mrf.mxu0
  %600 = vmatprep.mubr.f32.mxu0 0.0
  %601 = vmatmul.mubr.f32.gmra.mxu0 %v237
  %v602 = vpop.f32.mrf.mxu0
  %v603 = vadd.f32 0.0, %v602
  %v604 = vpop.f32.mrf.mxu0
  %605 = vmatprep.mubr.f32.mxu0 0.0
  %606 = vmatmul.mubr.f32.gmra.mxu0 %v240
  %v607 = vpop.f32.mrf.mxu0
  %v608 = vadd.f32 0.0, %v607
  %v609 = vpop.f32.mrf.mxu0
  %610 = vmatprep.mubr.f32.mxu0 0.0
  %611 = vmatmul.mubr.f32.gmra.mxu0 %v243
  %v612 = vpop.f32.mrf.mxu0
  %v613 = vadd.f32 0.0, %v612
  %v614 = vpop.f32.mrf.mxu0
  %615 = vmatprep.mubr.f32.mxu0 0.0
  %616 = vmatmul.mubr.f32.gmra.mxu0 %v246
  %v617 = vpop.f32.mrf.mxu0
  %v618 = vadd.f32 0.0, %v617
  %v619 = vpop.f32.mrf.mxu0
  %620 = vmatprep.mubr.f32.mxu0 0.0
  %621 = vmatmul.mubr.f32.gmra.mxu0 %v249
  %v622 = vpop.f32.mrf.mxu0
  %v623 = vadd.f32 0.0, %v622
  %v624 = vpop.f32.mrf.mxu0
  %625 = vmatprep.mubr.f32.mxu0 0.0
  %626 = vmatmul.mubr.f32.gmra.mxu0 %v252
  %v627 = vpop.f32.mrf.mxu0
  %v628 = vadd.f32 0.0, %v627
  %v629 = vpop.f32.mrf.mxu0
  %630 = vmatprep.mubr.f32.mxu0 0.0
  %631 = vmatmul.mubr.f32.gmra.mxu0 %v255
  %v632 = vpop.f32.mrf.mxu0
  %v633 = vadd.f32 0.0, %v632
  %v634 = vpop.f32.mrf.mxu0
  %635 = vmatprep.mubr.f32.mxu0 0.0
  %636 = vmatmul.mubr.f32.gmra.mxu0 %v258
  %v637 = vpop.f32.mrf.mxu0
  %v638 = vadd.f32 0.0, %v637
  %v639 = vpop.f32.mrf.mxu0
  %640 = vmatprep.mubr.f32.mxu0 0.0
  %641 = vmatmul.mubr.f32.gmra.mxu0 %v261
  %v642 = vpop.f32.mrf.mxu0
  %v643 = vadd.f32 0.0, %v642
  %v644 = vpop.f32.mrf.mxu0
  %645 = vmatprep.mubr.f32.mxu0 0.0
  %646 = vmatmul.mubr.f32.gmra.mxu0 %v264
  %v647 = vpop.f32.mrf.mxu0
  %v648 = vadd.f32 0.0, %v647
  %v649 = vpop.f32.mrf.mxu0
  %650 = vmatprep.mubr.f32.mxu0 0.0
  %651 = vmatmul.mubr.f32.gmra.mxu0 %v267
  %v652 = vpop.f32.mrf.mxu0
  %v653 = vadd.f32 0.0, %v652
  %v654 = vpop.f32.mrf.mxu0
  %655 = vmatprep.mubr.f32.mxu0 0.0
  %656 = vmatmul.mubr.f32.gmra.mxu0 %v270
  %v657 = vpop.f32.mrf.mxu0
  %v658 = vadd.f32 0.0, %v657
  %v659 = vpop.f32.mrf.mxu0
  %660 = vdwg.mxu0
  %661 = vst [vmem:[%s2] sm:$0xff] %v343
  %662 = vst [vmem:[%s2 + $0x8] sm:$0xff] %v348
  %663 = vst [vmem:[%s2 + $0x10] sm:$0xff] %v353
  %664 = vst [vmem:[%s2 + $0x18] sm:$0xff] %v358
  %665 = vst [vmem:[%s2 + $0x20] sm:$0xff] %v363
  %666 = vst [vmem:[%s2 + $0x28] sm:$0xff] %v368
  %667 = vst [vmem:[%s2 + $0x30] sm:$0xff] %v373
  %668 = vst [vmem:[%s2 + $0x38] sm:$0xff] %v378
  %669 = vst [vmem:[%s2 + $0x40] sm:$0xff] %v383
  %670 = vst [vmem:[%s2 + $0x48] sm:$0xff] %v388
  %671 = vst [vmem:[%s2 + $0x50] sm:$0xff] %v393
  %672 = vst [vmem:[%s2 + $0x58] sm:$0xff] %v398
  %673 = vst [vmem:[%s2 + $0x60] sm:$0xff] %v403
  %674 = vst [vmem:[%s2 + $0x68] sm:$0xff] %v408
  %675 = vst [vmem:[%s2 + $0x70] sm:$0xff] %v413
  %676 = vst [vmem:[%s2 + $0x78] sm:$0xff] %v418
  %677 = vst [vmem:[%s2 + $0x80] sm:$0xff] %v423
  %678 = vst [vmem:[%s2 + $0x88] sm:$0xff] %v428
  %679 = vst [vmem:[%s2 + $0x90] sm:$0xff] %v433
  %680 = vst [vmem:[%s2 + $0x98] sm:$0xff] %v438
  %681 = vst [vmem:[%s2 + $0xa0] sm:$0xff] %v443
  %682 = vst [vmem:[%s2 + $0xa8] sm:$0xff] %v448
  %683 = vst [vmem:[%s2 + $0xb0] sm:$0xff] %v453
  %684 = vst [vmem:[%s2 + $0xb8] sm:$0xff] %v458
  %685 = vst [vmem:[%s2 + $0xc0] sm:$0xff] %v463
  %686 = vst [vmem:[%s2 + $0xc8] sm:$0xff] %v468
  %687 = vst [vmem:[%s2 + $0xd0] sm:$0xff] %v473
  %688 = vst [vmem:[%s2 + $0xd8] sm:$0xff] %v478
  %689 = vst [vmem:[%s2 + $0xe0] sm:$0xff] %v483
  %690 = vst [vmem:[%s2 + $0xe8] sm:$0xff] %v488
  %691 = vst [vmem:[%s2 + $0xf0] sm:$0xff] %v493
  %692 = vst [vmem:[%s2 + $0xf8] sm:$0xff] %v498
  %693 = vst [vmem:[%s2 + $0x100] sm:$0xff] %v503
  %694 = vst [vmem:[%s2 + $0x108] sm:$0xff] %v508
  %695 = vst [vmem:[%s2 + $0x110] sm:$0xff] %v513
  %696 = vst [vmem:[%s2 + $0x118] sm:$0xff] %v518
  %697 = vst [vmem:[%s2 + $0x120] sm:$0xff] %v523
  %698 = vst [vmem:[%s2 + $0x128] sm:$0xff] %v528
  %699 = vst [vmem:[%s2 + $0x130] sm:$0xff] %v533
  %700 = vst [vmem:[%s2 + $0x138] sm:$0xff] %v538
  %701 = vst [vmem:[%s2 + $0x140] sm:$0xff] %v543
  %702 = vst [vmem:[%s2 + $0x148] sm:$0xff] %v548
  %703 = vst [vmem:[%s2 + $0x150] sm:$0xff] %v553
  %704 = vst [vmem:[%s2 + $0x158] sm:$0xff] %v558
  %705 = vst [vmem:[%s2 + $0x160] sm:$0xff] %v563
  %706 = vst [vmem:[%s2 + $0x168] sm:$0xff] %v568
  %707 = vst [vmem:[%s2 + $0x170] sm:$0xff] %v573
  %708 = vst [vmem:[%s2 + $0x178] sm:$0xff] %v578
  %709 = vst [vmem:[%s2 + $0x180] sm:$0xff] %v583
  %710 = vst [vmem:[%s2 + $0x188] sm:$0xff] %v588
  %711 = vst [vmem:[%s2 + $0x190] sm:$0xff] %v593
  %712 = vst [vmem:[%s2 + $0x198] sm:$0xff] %v598
  %713 = vst [vmem:[%s2 + $0x1a0] sm:$0xff] %v603
  %714 = vst [vmem:[%s2 + $0x1a8] sm:$0xff] %v608
  %715 = vst [vmem:[%s2 + $0x1b0] sm:$0xff] %v613
  %716 = vst [vmem:[%s2 + $0x1b8] sm:$0xff] %v618
  %717 = vst [vmem:[%s2 + $0x1c0] sm:$0xff] %v623
  %718 = vst [vmem:[%s2 + $0x1c8] sm:$0xff] %v628
  %719 = vst [vmem:[%s2 + $0x1d0] sm:$0xff] %v633
  %720 = vst [vmem:[%s2 + $0x1d8] sm:$0xff] %v638
  %721 = vst [vmem:[%s2 + $0x1e0] sm:$0xff] %v643
  %722 = vst [vmem:[%s2 + $0x1e8] sm:$0xff] %v648
  %723 = vst [vmem:[%s2 + $0x1f0] sm:$0xff] %v653
  %724 = vst [vmem:[%s2 + $0x1f8] sm:$0xff] %v658
  %v725 = vlaneseq
  %v726 = vshrl.u32 %v725, 7
  %v727 = vadd.s32 %v726, 8
  %v728 = vadd.s32 %v726, 16
  %v729 = vadd.s32 %v726, 24
  %v730 = vadd.s32 %v726, 32
  %v731 = vadd.s32 %v726, 40
  %v732 = vadd.s32 %v726, 48
  %v733 = vadd.s32 %v726, 56
  %v734 = vadd.s32 %v726, 64
  %v735 = vadd.s32 %v726, 72
  %v736 = vadd.s32 %v726, 80
  %v737 = vadd.s32 %v726, 88
  %v738 = vadd.s32 %v726, 96
  %v739 = vadd.s32 %v726, 104
  %v740 = vadd.s32 %v726, 112
  %v741 = vadd.s32 %v726, 120
  %v742 = vadd.s32 %v726, 128
  %v743 = vadd.s32 %v726, 136
  %v744 = vadd.s32 %v726, 144
  %v745 = vadd.s32 %v726, 152
  %v746 = vadd.s32 %v726, 160
  %v747 = vadd.s32 %v726, 168
  %v748 = vadd.s32 %v726, 176
  %v749 = vadd.s32 %v726, 184
  %v750 = vadd.s32 %v726, 192
  %v751 = vadd.s32 %v726, 200
  %v752 = vadd.s32 %v726, 208
  %v753 = vadd.s32 %v726, 216
  %v754 = vadd.s32 %v726, 224
  %v755 = vadd.s32 %v726, 232
  %v756 = vadd.s32 %v726, 240
  %v757 = vadd.s32 %v726, 248
  %v758 = vadd.s32 %v726, 256
  %v759 = vadd.s32 %v726, 264
  %v760 = vadd.s32 %v726, 272
  %v761 = vadd.s32 %v726, 280
  %v762 = vadd.s32 %v726, 288
  %v763 = vadd.s32 %v726, 296
  %v764 = vadd.s32 %v726, 304
  %v765 = vadd.s32 %v726, 312
  %v766 = vadd.s32 %v726, 320
  %v767 = vadd.s32 %v726, 328
  %v768 = vadd.s32 %v726, 336
  %v769 = vadd.s32 %v726, 344
  %v770 = vadd.s32 %v726, 352
  %v771 = vadd.s32 %v726, 360
  %v772 = vadd.s32 %v726, 368
  %v773 = vadd.s32 %v726, 376
  %v774 = vadd.s32 %v726, 384
  %v775 = vadd.s32 %v726, 392
  %v776 = vadd.s32 %v726, 400
  %v777 = vadd.s32 %v726, 408
  %v778 = vadd.s32 %v726, 416
  %v779 = vadd.s32 %v726, 424
  %v780 = vadd.s32 %v726, 432
  %v781 = vadd.s32 %v726, 440
  %v782 = vadd.s32 %v726, 448
  %v783 = vadd.s32 %v726, 456
  %v784 = vadd.s32 %v726, 464
  %v785 = vadd.s32 %v726, 472
  %v786 = vadd.s32 %v726, 480
  %v787 = vadd.s32 %v726, 488
  %v788 = vadd.s32 %v726, 496
  %v789 = vadd.s32 %v726, 504
  %s790 = smul.u32 0, 512
  %v791 = vstv %s790
  %v792 = vadd.s32 %v726, %v791
  %v793 = vadd.s32 %v727, %v791
  %v794 = vadd.s32 %v728, %v791
  %v795 = vadd.s32 %v729, %v791
  %v796 = vadd.s32 %v730, %v791
  %v797 = vadd.s32 %v731, %v791
  %v798 = vadd.s32 %v732, %v791
  %v799 = vadd.s32 %v733, %v791
  %v800 = vadd.s32 %v734, %v791
  %v801 = vadd.s32 %v735, %v791
  %v802 = vadd.s32 %v736, %v791
  %v803 = vadd.s32 %v737, %v791
  %v804 = vadd.s32 %v738, %v791
  %v805 = vadd.s32 %v739, %v791
  %v806 = vadd.s32 %v740, %v791
  %v807 = vadd.s32 %v741, %v791
  %v808 = vadd.s32 %v742, %v791
  %v809 = vadd.s32 %v743, %v791
  %v810 = vadd.s32 %v744, %v791
  %v811 = vadd.s32 %v745, %v791
  %v812 = vadd.s32 %v746, %v791
  %v813 = vadd.s32 %v747, %v791
  %v814 = vadd.s32 %v748, %v791
  %v815 = vadd.s32 %v749, %v791
  %v816 = vadd.s32 %v750, %v791
  %v817 = vadd.s32 %v751, %v791
  %v818 = vadd.s32 %v752, %v791
  %v819 = vadd.s32 %v753, %v791
  %v820 = vadd.s32 %v754, %v791
  %v821 = vadd.s32 %v755, %v791
  %v822 = vadd.s32 %v756, %v791
  %v823 = vadd.s32 %v757, %v791
  %v824 = vadd.s32 %v758, %v791
  %v825 = vadd.s32 %v759, %v791
  %v826 = vadd.s32 %v760, %v791
  %v827 = vadd.s32 %v761, %v791
  %v828 = vadd.s32 %v762, %v791
  %v829 = vadd.s32 %v763, %v791
  %v830 = vadd.s32 %v764, %v791
  %v831 = vadd.s32 %v765, %v791
  %v832 = vadd.s32 %v766, %v791
  %v833 = vadd.s32 %v767, %v791
  %v834 = vadd.s32 %v768, %v791
  %v835 = vadd.s32 %v769, %v791
  %v836 = vadd.s32 %v770, %v791
  %v837 = vadd.s32 %v771, %v791
  %v838 = vadd.s32 %v772, %v791
  %v839 = vadd.s32 %v773, %v791
  %v840 = vadd.s32 %v774, %v791
  %v841 = vadd.s32 %v775, %v791
  %v842 = vadd.s32 %v776, %v791
  %v843 = vadd.s32 %v777, %v791
  %v844 = vadd.s32 %v778, %v791
  %v845 = vadd.s32 %v779, %v791
  %v846 = vadd.s32 %v780, %v791
  %v847 = vadd.s32 %v781, %v791
  %v848 = vadd.s32 %v782, %v791
  %v849 = vadd.s32 %v783, %v791
  %v850 = vadd.s32 %v784, %v791
  %v851 = vadd.s32 %v785, %v791
  %v852 = vadd.s32 %v786, %v791
  %v853 = vadd.s32 %v787, %v791
  %v854 = vadd.s32 %v788, %v791
  %v855 = vadd.s32 %v789, %v791
  %vm856 = vcmp.lt.s32.totalorder %v792, 512
  %vm857 = vcmp.lt.s32.totalorder %v793, 512
  %vm858 = vcmp.lt.s32.totalorder %v794, 512
  %vm859 = vcmp.lt.s32.totalorder %v795, 512
  %vm860 = vcmp.lt.s32.totalorder %v796, 512
  %vm861 = vcmp.lt.s32.totalorder %v797, 512
  %vm862 = vcmp.lt.s32.totalorder %v798, 512
  %vm863 = vcmp.lt.s32.totalorder %v799, 512
  %vm864 = vcmp.lt.s32.totalorder %v800, 512
  %vm865 = vcmp.lt.s32.totalorder %v801, 512
  %vm866 = vcmp.lt.s32.totalorder %v802, 512
  %vm867 = vcmp.lt.s32.totalorder %v803, 512
  %vm868 = vcmp.lt.s32.totalorder %v804, 512
  %vm869 = vcmp.lt.s32.totalorder %v805, 512
  %vm870 = vcmp.lt.s32.totalorder %v806, 512
  %vm871 = vcmp.lt.s32.totalorder %v807, 512
  %vm872 = vcmp.lt.s32.totalorder %v808, 512
  %vm873 = vcmp.lt.s32.totalorder %v809, 512
  %vm874 = vcmp.lt.s32.totalorder %v810, 512
  %vm875 = vcmp.lt.s32.totalorder %v811, 512
  %vm876 = vcmp.lt.s32.totalorder %v812, 512
  %vm877 = vcmp.lt.s32.totalorder %v813, 512
  %vm878 = vcmp.lt.s32.totalorder %v814, 512
  %vm879 = vcmp.lt.s32.totalorder %v815, 512
  %vm880 = vcmp.lt.s32.totalorder %v816, 512
  %vm881 = vcmp.lt.s32.totalorder %v817, 512
  %vm882 = vcmp.lt.s32.totalorder %v818, 512
  %vm883 = vcmp.lt.s32.totalorder %v819, 512
  %vm884 = vcmp.lt.s32.totalorder %v820, 512
  %vm885 = vcmp.lt.s32.totalorder %v821, 512
  %vm886 = vcmp.lt.s32.totalorder %v822, 512
  %vm887 = vcmp.lt.s32.totalorder %v823, 512
  %vm888 = vcmp.lt.s32.totalorder %v824, 512
  %vm889 = vcmp.lt.s32.totalorder %v825, 512
  %vm890 = vcmp.lt.s32.totalorder %v826, 512
  %vm891 = vcmp.lt.s32.totalorder %v827, 512
  %vm892 = vcmp.lt.s32.totalorder %v828, 512
  %vm893 = vcmp.lt.s32.totalorder %v829, 512
  %vm894 = vcmp.lt.s32.totalorder %v830, 512
  %vm895 = vcmp.lt.s32.totalorder %v831, 512
  %vm896 = vcmp.lt.s32.totalorder %v832, 512
  %vm897 = vcmp.lt.s32.totalorder %v833, 512
  %vm898 = vcmp.lt.s32.totalorder %v834, 512
  %vm899 = vcmp.lt.s32.totalorder %v835, 512
  %vm900 = vcmp.lt.s32.totalorder %v836, 512
  %vm901 = vcmp.lt.s32.totalorder %v837, 512
  %vm902 = vcmp.lt.s32.totalorder %v838, 512
  %vm903 = vcmp.lt.s32.totalorder %v839, 512
  %vm904 = vcmp.lt.s32.totalorder %v840, 512
  %vm905 = vcmp.lt.s32.totalorder %v841, 512
  %vm906 = vcmp.lt.s32.totalorder %v842, 512
  %vm907 = vcmp.lt.s32.totalorder %v843, 512
  %vm908 = vcmp.lt.s32.totalorder %v844, 512
  %vm909 = vcmp.lt.s32.totalorder %v845, 512
  %vm910 = vcmp.lt.s32.totalorder %v846, 512
  %vm911 = vcmp.lt.s32.totalorder %v847, 512
  %vm912 = vcmp.lt.s32.totalorder %v848, 512
  %vm913 = vcmp.lt.s32.totalorder %v849, 512
  %vm914 = vcmp.lt.s32.totalorder %v850, 512
  %vm915 = vcmp.lt.s32.totalorder %v851, 512
  %vm916 = vcmp.lt.s32.totalorder %v852, 512
  %vm917 = vcmp.lt.s32.totalorder %v853, 512
  %vm918 = vcmp.lt.s32.totalorder %v854, 512
  %vm919 = vcmp.lt.s32.totalorder %v855, 512
  %v920 = vsel %vm856, %v343, 0.0
  %v921 = vsel %vm857, %v348, 0.0
  %v922 = vsel %vm858, %v353, 0.0
  %v923 = vsel %vm859, %v358, 0.0
  %v924 = vsel %vm860, %v363, 0.0
  %v925 = vsel %vm861, %v368, 0.0
  %v926 = vsel %vm862, %v373, 0.0
  %v927 = vsel %vm863, %v378, 0.0
  %v928 = vsel %vm864, %v383, 0.0
  %v929 = vsel %vm865, %v388, 0.0
  %v930 = vsel %vm866, %v393, 0.0
  %v931 = vsel %vm867, %v398, 0.0
  %v932 = vsel %vm868, %v403, 0.0
  %v933 = vsel %vm869, %v408, 0.0
  %v934 = vsel %vm870, %v413, 0.0
  %v935 = vsel %vm871, %v418, 0.0
  %v936 = vsel %vm872, %v423, 0.0
  %v937 = vsel %vm873, %v428, 0.0
  %v938 = vsel %vm874, %v433, 0.0
  %v939 = vsel %vm875, %v438, 0.0
  %v940 = vsel %vm876, %v443, 0.0
  %v941 = vsel %vm877, %v448, 0.0
  %v942 = vsel %vm878, %v453, 0.0
  %v943 = vsel %vm879, %v458, 0.0
  %v944 = vsel %vm880, %v463, 0.0
  %v945 = vsel %vm881, %v468, 0.0
  %v946 = vsel %vm882, %v473, 0.0
  %v947 = vsel %vm883, %v478, 0.0
  %v948 = vsel %vm884, %v483, 0.0
  %v949 = vsel %vm885, %v488, 0.0
  %v950 = vsel %vm886, %v493, 0.0
  %v951 = vsel %vm887, %v498, 0.0
  %v952 = vsel %vm888, %v503, 0.0
  %v953 = vsel %vm889, %v508, 0.0
  %v954 = vsel %vm890, %v513, 0.0
  %v955 = vsel %vm891, %v518, 0.0
  %v956 = vsel %vm892, %v523, 0.0
  %v957 = vsel %vm893, %v528, 0.0
  %v958 = vsel %vm894, %v533, 0.0
  %v959 = vsel %vm895, %v538, 0.0
  %v960 = vsel %vm896, %v543, 0.0
  %v961 = vsel %vm897, %v548, 0.0
  %v962 = vsel %vm898, %v553, 0.0
  %v963 = vsel %vm899, %v558, 0.0
  %v964 = vsel %vm900, %v563, 0.0
  %v965 = vsel %vm901, %v568, 0.0
  %v966 = vsel %vm902, %v573, 0.0
  %v967 = vsel %vm903, %v578, 0.0
  %v968 = vsel %vm904, %v583, 0.0
  %v969 = vsel %vm905, %v588, 0.0
  %v970 = vsel %vm906, %v593, 0.0
  %v971 = vsel %vm907, %v598, 0.0
  %v972 = vsel %vm908, %v603, 0.0
  %v973 = vsel %vm909, %v608, 0.0
  %v974 = vsel %vm910, %v613, 0.0
  %v975 = vsel %vm911, %v618, 0.0
  %v976 = vsel %vm912, %v623, 0.0
  %v977 = vsel %vm913, %v628, 0.0
  %v978 = vsel %vm914, %v633, 0.0
  %v979 = vsel %vm915, %v638, 0.0
  %v980 = vsel %vm916, %v643, 0.0
  %v981 = vsel %vm917, %v648, 0.0
  %v982 = vsel %vm918, %v653, 0.0
  %v983 = vsel %vm919, %v658, 0.0
  %v984 = vadd.f32 %v920, %v921
  %v985 = vadd.f32 %v984, %v922
  %v986 = vadd.f32 %v985, %v923
  %v987 = vadd.f32 %v986, %v924
  %v988 = vadd.f32 %v987, %v925
  %v989 = vadd.f32 %v988, %v926
  %v990 = vadd.f32 %v989, %v927
  %v991 = vadd.f32 %v990, %v928
  %v992 = vadd.f32 %v991, %v929
  %v993 = vadd.f32 %v992, %v930
  %v994 = vadd.f32 %v993, %v931
  %v995 = vadd.f32 %v994, %v932
  %v996 = vadd.f32 %v995, %v933
  %v997 = vadd.f32 %v996, %v934
  %v998 = vadd.f32 %v997, %v935
  %v999 = vadd.f32 %v998, %v936
  %v1000 = vadd.f32 %v999, %v937
  %v1001 = vadd.f32 %v1000, %v938
  %v1002 = vadd.f32 %v1001, %v939
  %v1003 = vadd.f32 %v1002, %v940
  %v1004 = vadd.f32 %v1003, %v941
  %v1005 = vadd.f32 %v1004, %v942
  %v1006 = vadd.f32 %v1005, %v943
  %v1007 = vadd.f32 %v1006, %v944
  %v1008 = vadd.f32 %v1007, %v945
  %v1009 = vadd.f32 %v1008, %v946
  %v1010 = vadd.f32 %v1009, %v947
  %v1011 = vadd.f32 %v1010, %v948
  %v1012 = vadd.f32 %v1011, %v949
  %v1013 = vadd.f32 %v1012, %v950
  %v1014 = vadd.f32 %v1013, %v951
  %v1015 = vadd.f32 %v1014, %v952
  %v1016 = vadd.f32 %v1015, %v953
  %v1017 = vadd.f32 %v1016, %v954
  %v1018 = vadd.f32 %v1017, %v955
  %v1019 = vadd.f32 %v1018, %v956
  %v1020 = vadd.f32 %v1019, %v957
  %v1021 = vadd.f32 %v1020, %v958
  %v1022 = vadd.f32 %v1021, %v959
  %v1023 = vadd.f32 %v1022, %v960
  %v1024 = vadd.f32 %v1023, %v961
  %v1025 = vadd.f32 %v1024, %v962
  %v1026 = vadd.f32 %v1025, %v963
  %v1027 = vadd.f32 %v1026, %v964
  %v1028 = vadd.f32 %v1027, %v965
  %v1029 = vadd.f32 %v1028, %v966
  %v1030 = vadd.f32 %v1029, %v967
  %v1031 = vadd.f32 %v1030, %v968
  %v1032 = vadd.f32 %v1031, %v969
  %v1033 = vadd.f32 %v1032, %v970
  %v1034 = vadd.f32 %v1033, %v971
  %v1035 = vadd.f32 %v1034, %v972
  %v1036 = vadd.f32 %v1035, %v973
  %v1037 = vadd.f32 %v1036, %v974
  %v1038 = vadd.f32 %v1037, %v975
  %v1039 = vadd.f32 %v1038, %v976
  %v1040 = vadd.f32 %v1039, %v977
  %v1041 = vadd.f32 %v1040, %v978
  %v1042 = vadd.f32 %v1041, %v979
  %v1043 = vadd.f32 %v1042, %v980
  %v1044 = vadd.f32 %v1043, %v981
  %v1045 = vadd.f32 %v1044, %v982
  %v1046 = vadd.f32 %v1045, %v983
  %v1047 = vrot.slane %v1046, 4
  %v1048 = vadd.f32 %v1046, %v1047
  %v1049 = vrot.slane %v1048, 2
  %v1050 = vadd.f32 %v1048, %v1049
  %v1051 = vrot.slane %v1050, 1
  %v1052 = vadd.f32 %v1050, %v1051
  %v1053 = vmul.f32 %v920, %v920
  %v1054 = vmul.f32 %v921, %v921
  %v1055 = vmul.f32 %v922, %v922
  %v1056 = vmul.f32 %v923, %v923
  %v1057 = vmul.f32 %v924, %v924
  %v1058 = vmul.f32 %v925, %v925
  %v1059 = vmul.f32 %v926, %v926
  %v1060 = vmul.f32 %v927, %v927
  %v1061 = vmul.f32 %v928, %v928
  %v1062 = vmul.f32 %v929, %v929
  %v1063 = vmul.f32 %v930, %v930
  %v1064 = vmul.f32 %v931, %v931
  %v1065 = vmul.f32 %v932, %v932
  %v1066 = vmul.f32 %v933, %v933
  %v1067 = vmul.f32 %v934, %v934
  %v1068 = vmul.f32 %v935, %v935
  %v1069 = vmul.f32 %v936, %v936
  %v1070 = vmul.f32 %v937, %v937
  %v1071 = vmul.f32 %v938, %v938
  %v1072 = vmul.f32 %v939, %v939
  %v1073 = vmul.f32 %v940, %v940
  %v1074 = vmul.f32 %v941, %v941
  %v1075 = vmul.f32 %v942, %v942
  %v1076 = vmul.f32 %v943, %v943
  %v1077 = vmul.f32 %v944, %v944
  %v1078 = vmul.f32 %v945, %v945
  %v1079 = vmul.f32 %v946, %v946
  %v1080 = vmul.f32 %v947, %v947
  %v1081 = vmul.f32 %v948, %v948
  %v1082 = vmul.f32 %v949, %v949
  %v1083 = vmul.f32 %v950, %v950
  %v1084 = vmul.f32 %v951, %v951
  %v1085 = vmul.f32 %v952, %v952
  %v1086 = vmul.f32 %v953, %v953
  %v1087 = vmul.f32 %v954, %v954
  %v1088 = vmul.f32 %v955, %v955
  %v1089 = vmul.f32 %v956, %v956
  %v1090 = vmul.f32 %v957, %v957
  %v1091 = vmul.f32 %v958, %v958
  %v1092 = vmul.f32 %v959, %v959
  %v1093 = vmul.f32 %v960, %v960
  %v1094 = vmul.f32 %v961, %v961
  %v1095 = vmul.f32 %v962, %v962
  %v1096 = vmul.f32 %v963, %v963
  %v1097 = vmul.f32 %v964, %v964
  %v1098 = vmul.f32 %v965, %v965
  %v1099 = vmul.f32 %v966, %v966
  %v1100 = vmul.f32 %v967, %v967
  %v1101 = vmul.f32 %v968, %v968
  %v1102 = vmul.f32 %v969, %v969
  %v1103 = vmul.f32 %v970, %v970
  %v1104 = vmul.f32 %v971, %v971
  %v1105 = vmul.f32 %v972, %v972
  %v1106 = vmul.f32 %v973, %v973
  %v1107 = vmul.f32 %v974, %v974
  %v1108 = vmul.f32 %v975, %v975
  %v1109 = vmul.f32 %v976, %v976
  %v1110 = vmul.f32 %v977, %v977
  %v1111 = vmul.f32 %v978, %v978
  %v1112 = vmul.f32 %v979, %v979
  %v1113 = vmul.f32 %v980, %v980
  %v1114 = vmul.f32 %v981, %v981
  %v1115 = vmul.f32 %v982, %v982
  %v1116 = vmul.f32 %v983, %v983
  %v1117 = vadd.f32 %v1053, %v1054
  %v1118 = vadd.f32 %v1117, %v1055
  %v1119 = vadd.f32 %v1118, %v1056
  %v1120 = vadd.f32 %v1119, %v1057
  %v1121 = vadd.f32 %v1120, %v1058
  %v1122 = vadd.f32 %v1121, %v1059
  %v1123 = vadd.f32 %v1122, %v1060
  %v1124 = vadd.f32 %v1123, %v1061
  %v1125 = vadd.f32 %v1124, %v1062
  %v1126 = vadd.f32 %v1125, %v1063
  %v1127 = vadd.f32 %v1126, %v1064
  %v1128 = vadd.f32 %v1127, %v1065
  %v1129 = vadd.f32 %v1128, %v1066
  %v1130 = vadd.f32 %v1129, %v1067
  %v1131 = vadd.f32 %v1130, %v1068
  %v1132 = vadd.f32 %v1131, %v1069
  %v1133 = vadd.f32 %v1132, %v1070
  %v1134 = vadd.f32 %v1133, %v1071
  %v1135 = vadd.f32 %v1134, %v1072
  %v1136 = vadd.f32 %v1135, %v1073
  %v1137 = vadd.f32 %v1136, %v1074
  %v1138 = vadd.f32 %v1137, %v1075
  %v1139 = vadd.f32 %v1138, %v1076
  %v1140 = vadd.f32 %v1139, %v1077
  %v1141 = vadd.f32 %v1140, %v1078
  %v1142 = vadd.f32 %v1141, %v1079
  %v1143 = vadd.f32 %v1142, %v1080
  %v1144 = vadd.f32 %v1143, %v1081
  %v1145 = vadd.f32 %v1144, %v1082
  %v1146 = vadd.f32 %v1145, %v1083
  %v1147 = vadd.f32 %v1146, %v1084
  %v1148 = vadd.f32 %v1147, %v1085
  %v1149 = vadd.f32 %v1148, %v1086
  %v1150 = vadd.f32 %v1149, %v1087
  %v1151 = vadd.f32 %v1150, %v1088
  %v1152 = vadd.f32 %v1151, %v1089
  %v1153 = vadd.f32 %v1152, %v1090
  %v1154 = vadd.f32 %v1153, %v1091
  %v1155 = vadd.f32 %v1154, %v1092
  %v1156 = vadd.f32 %v1155, %v1093
  %v1157 = vadd.f32 %v1156, %v1094
  %v1158 = vadd.f32 %v1157, %v1095
  %v1159 = vadd.f32 %v1158, %v1096
  %v1160 = vadd.f32 %v1159, %v1097
  %v1161 = vadd.f32 %v1160, %v1098
  %v1162 = vadd.f32 %v1161, %v1099
  %v1163 = vadd.f32 %v1162, %v1100
  %v1164 = vadd.f32 %v1163, %v1101
  %v1165 = vadd.f32 %v1164, %v1102
  %v1166 = vadd.f32 %v1165, %v1103
  %v1167 = vadd.f32 %v1166, %v1104
  %v1168 = vadd.f32 %v1167, %v1105
  %v1169 = vadd.f32 %v1168, %v1106
  %v1170 = vadd.f32 %v1169, %v1107
  %v1171 = vadd.f32 %v1170, %v1108
  %v1172 = vadd.f32 %v1171, %v1109
  %v1173 = vadd.f32 %v1172, %v1110
  %v1174 = vadd.f32 %v1173, %v1111
  %v1175 = vadd.f32 %v1174, %v1112
  %v1176 = vadd.f32 %v1175, %v1113
  %v1177 = vadd.f32 %v1176, %v1114
  %v1178 = vadd.f32 %v1177, %v1115
  %v1179 = vadd.f32 %v1178, %v1116
  %v1180 = vrot.slane %v1179, 4
  %v1181 = vadd.f32 %v1179, %v1180
  %v1182 = vrot.slane %v1181, 2
  %v1183 = vadd.f32 %v1181, %v1182
  %v1184 = vrot.slane %v1183, 1
  %v1185 = vadd.f32 %v1183, %v1184
  %1186 = vst [vmem:[%s3] sm:$0xff] %v1052
  %1187 = vst [vmem:[%s4] sm:$0xff] %v1185
  // Predicated region
  $region10: #{conv_block_forward.2} parent=0 // pred_check
    _
  $region11: #{conv_block_forward.2} parent=0 // pred_check_branch
    %1189 = sbr.rel (0) target = $region13
  $region12: #{conv_block_forward.2} parent=0 // pred_region
    _
  $region13: #{conv_block_forward.2} parent=0 // pred_fallthru
    _
  // Predicated region
  $region14: #{conv_block_forward.2} parent=0 // pred_check
    _
  $region15: #{conv_block_forward.2} parent=0 // pred_check_branch
    %1191 = sbr.rel (0) target = $region17
  $region16: #{conv_block_forward.2} parent=0 // pred_region
    _
  $region17: #{conv_block_forward.2} parent=0 // pred_fallthru
    _
  // Predicated region
  $region18: #{conv_block_forward.2} parent=0 // pred_check
    _
  $region19: #{conv_block_forward.2} parent=0 // pred_check_branch
    %1193 = sbr.rel (0) target = $region21
  $region20: #{conv_block_forward.2} parent=0 // pred_region
    _
  $region21: #{conv_block_forward.2} parent=0 // pred_fallthru
    _
  // Predicated region
  $region22: #{conv_block_forward.2} parent=0 // pred_check
    _
  $region23: #{conv_block_forward.2} parent=0 // pred_check_branch
    %1195 = sbr.rel (0) target = $region25
  $region24: #{conv_block_forward.2} parent=0 // pred_region
    _
  $region25: #{conv_block_forward.2} parent=0 // pred_fallthru
    _
  // Predicated region
  $region26: #{conv_block_forward.2} parent=0 // pred_check
    _
  $region27: #{conv_block_forward.2} parent=0 // pred_check_branch
    %1197 = sbr.rel (0) target = $region29
  $region28: #{conv_block_forward.2} parent=0 // pred_region
    _
  $region29: #{conv_block_forward.2} parent=0 // pred_fallthru
    _
  // Predicated region
  $region30: #{conv_block_forward.2} parent=0 // pred_check
    _
  $region31: #{conv_block_forward.2} parent=0 // pred_check_branch
    %1199 = sbr.rel (0) target = $region33
  $region32: #{conv_block_forward.2} parent=0 // pred_region
    _
  $region33: #{conv_block_forward.2} parent=0 // pred_fallthru
    _

</llo_original>
